<compile_context>
chip_gen: v7x
topology: tpu7x:2x2x1
jax: 0.10.0
libtpu: 0.0.40
codegen_flags: <defaults>
</compile_context>

<pallas_src>
import jax
import jax.numpy as jnp
from jax.experimental import pallas as pl
from jax.experimental.pallas import tpu as pltpu

FEAT_DIM = 66        # nn.Linear(66, embed_size)
EMBED_SIZE = 384     # hidden of the embedding MLP
T5_D_MODEL = 1024    # nn.Linear(embed_size, 1024)


def _cdiv(a, b):
    return -(-a // b)


def _round_up(x, m):
    return _cdiv(x, m) * m


def _choose_row_tile(M, tm_max):
    """Row tile: multiple of 8 (sublane), <= tm_max, and for M > 128 an even
    number (>= 2) of grid steps so v7x's two TensorCores are both fed."""
    if M <= 128:
        return max(8, _round_up(M, 8))          # single step, minimal block
    n128 = _cdiv(M, 128)
    chunks_max = max(1, tm_max // 128)
    steps = 2 * _cdiv(n128, 2 * chunks_max)     # even step count
    return 128 * _cdiv(n128, steps)


def _embed_mlp_kernel(x_ref, w1_ref, b1_ref, w2_ref, b2_ref, o_ref):
    # x_ref:  (tm, 66)    f32  (cast to bf16 in-kernel, hidden under MXU slack)
    # w1_ref: (66, 384)   bf16     b1_ref: (1, 384)   f32
    # w2_ref: (384, 1024) bf16     b2_ref: (1, 1024)  f32
    # o_ref:  (tm, 1024)  bf16 (default)
    x = x_ref[...].astype(jnp.bfloat16)
    h = jnp.dot(x, w1_ref[...],
                preferred_element_type=jnp.float32)      # bf16 MXU, f32 acc
    h = jnp.maximum(h + b1_ref[...], 0.0)                # f32 bias + ReLU (VPU)
    h = h.astype(jnp.bfloat16)                           # back to bf16 for MXU
    out = jnp.dot(h, w2_ref[...],
                  preferred_element_type=jnp.float32)    # bf16 MXU, f32 acc
    out = out + b2_ref[...]
    o_ref[...] = out.astype(o_ref.dtype)


def embedding_mlp(x_flat, w1_bf16, b1_2d, w2_bf16, b2_2d, *,
                  tm_max=1024, out_dtype=jnp.bfloat16, min_pallas_rows=0):
    """x_flat: (M, 66) f32 -> (M, 1024) via fused Pallas MLP kernel.

    Weights must already be bf16 and biases (1, N) f32 (see init_params), so
    the wrapper does no per-call casts.  No padding / post-slice: the grid is
    cdiv(M, tm) and Pallas masks the ragged last block's writeback.
    """
    M, K = x_flat.shape
    assert K == FEAT_DIM
    assert w1_bf16.dtype == jnp.bfloat16 and w2_bf16.dtype == jnp.bfloat16

    if M < min_pallas_rows:
        # Tiny-M path: pallas_call launch + pipeline prologue dominates; run in
        # plain XLA instead (same bf16-MXU / f32-acc math).
        h = jnp.maximum(
            jnp.dot(x_flat.astype(jnp.bfloat16), w1_bf16,
                    preferred_element_type=jnp.float32) + b1_2d, 0.0)
        out = jnp.dot(h.astype(jnp.bfloat16), w2_bf16,
                      preferred_element_type=jnp.float32) + b2_2d
        return out.astype(out_dtype)

    tm = _choose_row_tile(M, tm_max)
    grid = (_cdiv(M, tm),)

    flops = 2 * M * (FEAT_DIM * EMBED_SIZE + EMBED_SIZE * T5_D_MODEL)
    bytes_accessed = (
        M * FEAT_DIM * 4                                   # x read (f32)
        + w1_bf16.size * 2 + w2_bf16.size * 2              # bf16 weights
        + b1_2d.size * 4 + b2_2d.size * 4                  # f32 biases
        + M * T5_D_MODEL * jnp.dtype(out_dtype).itemsize   # output writeback
    )

    return pl.pallas_call(
        _embed_mlp_kernel,
        out_shape=jax.ShapeDtypeStruct((M, T5_D_MODEL), out_dtype),
        grid_spec=pltpu.PrefetchScalarGridSpec(
            num_scalar_prefetch=0,
            grid=grid,
            in_specs=[
                pl.BlockSpec((tm, FEAT_DIM), lambda i: (i, 0)),
                pl.BlockSpec((FEAT_DIM, EMBED_SIZE), lambda i: (0, 0)),
                pl.BlockSpec((1, EMBED_SIZE), lambda i: (0, 0)),
                pl.BlockSpec((EMBED_SIZE, T5_D_MODEL), lambda i: (0, 0)),
                pl.BlockSpec((1, T5_D_MODEL), lambda i: (0, 0)),
            ],
            out_specs=pl.BlockSpec((tm, T5_D_MODEL), lambda i: (i, 0)),
        ),
        compiler_params=pltpu.CompilerParams(
            dimension_semantics=("parallel",),
        ),
        cost_estimate=pl.CostEstimate(
            flops=flops, transcendentals=0, bytes_accessed=bytes_accessed),
    )(x_flat, w1_bf16, b1_2d, w2_bf16, b2_2d)


def simple_t5_embed_forward(input_ids, attention_mask, params):
    """Mirrors SimpleT5Model.forward(use_embeds=True) up to the T5 call.

    input_ids: (B, S, 66) float features.
    Returns input_embeds: (B, S, 1024) bf16 — exactly what would be fed to
    self.t5(inputs_embeds=...).  attention_mask is passed through unchanged.
    """
    B, S, F = input_ids.shape
    x_flat = input_ids.reshape(B * S, F).astype(jnp.float32)
    out_flat = embedding_mlp(x_flat, params["w1"], params["b1"],
                             params["w2"], params["b2"])
    input_embeds = out_flat.reshape(B, S, T5_D_MODEL)
    # TODO(synk): output = t5(inputs_embeds=input_embeds, attention_mask=...)
    return input_embeds, attention_mask


def init_params(key):
    """Deterministic init matching nn.Linear shapes (kaiming-uniform style).

    Weights are stored persistently in bf16 (cast once here, not per forward);
    biases are stored as (1, N) f32 so the kernel adds them at full precision.
    Stored as (in, out) so the kernel computes x @ W (PyTorch stores (out, in)).
    """
    k1, k2, k3, k4 = jax.random.split(key, 4)
    lim1 = 1.0 / jnp.sqrt(FEAT_DIM)
    lim2 = 1.0 / jnp.sqrt(EMBED_SIZE)
    return {
        "w1": jax.random.uniform(k1, (FEAT_DIM, EMBED_SIZE), jnp.float32,
                                 -lim1, lim1).astype(jnp.bfloat16),
        "b1": jax.random.uniform(k2, (1, EMBED_SIZE), jnp.float32, -lim1, lim1),
        "w2": jax.random.uniform(k3, (EMBED_SIZE, T5_D_MODEL), jnp.float32,
                                 -lim2, lim2).astype(jnp.bfloat16),
        "b2": jax.random.uniform(k4, (1, T5_D_MODEL), jnp.float32, -lim2, lim2),
    }


if __name__ == "__main__":
    key = jax.random.PRNGKey(0)
    k_x, k_p = jax.random.split(key)

    B, S = 2, 8
    input_ids = jax.random.normal(k_x, (B, S, FEAT_DIM), jnp.float32)
    attention_mask = jnp.ones((B, S), jnp.float32)
    params = init_params(k_p)

    fwd = jax.jit(simple_t5_embed_forward)
    embeds, _ = fwd(input_ids, attention_mask, params)
    embeds = jax.block_until_ready(embeds)

    # Pure-JAX f32 reference of the same MLP (using the same bf16 weights).
    # Kernel runs bf16 MXU matmuls with f32 accumulation and writes bf16 output,
    # so tolerances are loosened accordingly.
    x_flat = input_ids.reshape(B * S, FEAT_DIM)
    w1f = params["w1"].astype(jnp.float32)
    w2f = params["w2"].astype(jnp.float32)
    ref = jnp.maximum(x_flat @ w1f + params["b1"], 0.0) @ w2f + params["b2"]
    ref = ref.reshape(B, S, T5_D_MODEL)

    assert embeds.shape == (B, S, T5_D_MODEL)
    assert embeds.dtype == jnp.bfloat16
    assert jnp.allclose(embeds.astype(jnp.float32), ref, atol=5e-2, rtol=5e-2)

    print("KERNEL_OK")
</pallas_src>

<mosaic_0001>
module attributes {stable_mosaic.version = 11 : i64} {
  func.func @_embed_mlp_kernel(%arg0: i32, %arg1: memref<16x66xf32, #tpu.memory_space<vmem>>, %arg2: memref<66x384xbf16, #tpu.memory_space<vmem>>, %arg3: memref<1x384xf32, #tpu.memory_space<vmem>>, %arg4: memref<384x1024xbf16, #tpu.memory_space<vmem>>, %arg5: memref<1x1024xf32, #tpu.memory_space<vmem>>, %arg6: memref<16x1024xbf16, #tpu.memory_space<vmem>>) attributes {dimension_semantics = [#tpu.dimension_semantics<parallel>], iteration_bounds = array<i64: 1>, scalar_prefetch = 0 : i64, scratch_operands = 0 : i64, tpu.core_type = #tpu.core_type<tc>, window_params = [{transform_indices = @transform_0, window_bounds = array<i64: 16, 66>}, {pipeline_mode = #tpu.pipeline_mode<synchronous>, transform_indices = @transform_1, window_bounds = array<i64: 66, 384>}, {pipeline_mode = #tpu.pipeline_mode<synchronous>, transform_indices = @transform_2, window_bounds = array<i64: 1, 384>}, {pipeline_mode = #tpu.pipeline_mode<synchronous>, transform_indices = @transform_3, window_bounds = array<i64: 384, 1024>}, {pipeline_mode = #tpu.pipeline_mode<synchronous>, transform_indices = @transform_4, window_bounds = array<i64: 1, 1024>}, {transform_indices = @transform_5, window_bounds = array<i64: 16, 1024>}]} {
    %c0 = arith.constant 0 : index
    %c0_0 = arith.constant 0 : index
    %0 = vector.load %arg1[%c0, %c0_0] : memref<16x66xf32, #tpu.memory_space<vmem>>, vector<16x66xf32>
    %1 = arith.truncf %0 : vector<16x66xf32> to vector<16x66xbf16>
    %c0_1 = arith.constant 0 : index
    %c0_2 = arith.constant 0 : index
    %2 = vector.load %arg2[%c0_1, %c0_2] : memref<66x384xbf16, #tpu.memory_space<vmem>>, vector<66x384xbf16>
    %cst = arith.constant dense<0.000000e+00> : vector<16x384xf32>
    %3 = tpu.matmul %1, %2, %cst {dimension_numbers = #tpu.dot_dimension_numbers<[1], [0], [0], [1], [0, 0, 1, 1], [], []>} : vector<16x66xbf16>, vector<66x384xbf16>, vector<16x384xf32> -> vector<16x384xf32>
    %c0_3 = arith.constant 0 : index
    %c0_4 = arith.constant 0 : index
    %4 = vector.load %arg3[%c0_3, %c0_4] : memref<1x384xf32, #tpu.memory_space<vmem>>, vector<1x384xf32>
    %5 = vector.broadcast %4 : vector<1x384xf32> to vector<16x384xf32>
    %6 = arith.addf %3, %5 : vector<16x384xf32>
    %cst_5 = arith.constant 0.000000e+00 : f32
    %7 = vector.broadcast %cst_5 : f32 to vector<16x384xf32>
    %8 = arith.maximumf %6, %7 : vector<16x384xf32>
    %9 = arith.truncf %8 : vector<16x384xf32> to vector<16x384xbf16>
    %c0_6 = arith.constant 0 : index
    %c0_7 = arith.constant 0 : index
    %10 = vector.load %arg4[%c0_6, %c0_7] : memref<384x1024xbf16, #tpu.memory_space<vmem>>, vector<384x1024xbf16>
    %cst_8 = arith.constant dense<0.000000e+00> : vector<16x1024xf32>
    %11 = tpu.matmul %9, %10, %cst_8 {dimension_numbers = #tpu.dot_dimension_numbers<[1], [0], [0], [1], [0, 0, 1, 1], [], []>} : vector<16x384xbf16>, vector<384x1024xbf16>, vector<16x1024xf32> -> vector<16x1024xf32>
    %c0_9 = arith.constant 0 : index
    %c0_10 = arith.constant 0 : index
    %12 = vector.load %arg5[%c0_9, %c0_10] : memref<1x1024xf32, #tpu.memory_space<vmem>>, vector<1x1024xf32>
    %13 = vector.broadcast %12 : vector<1x1024xf32> to vector<16x1024xf32>
    %14 = arith.addf %11, %13 : vector<16x1024xf32>
    %15 = arith.truncf %14 : vector<16x1024xf32> to vector<16x1024xbf16>
    %c0_11 = arith.constant 0 : index
    %c0_12 = arith.constant 0 : index
    %16 = vector.load %arg6[%c0_11, %c0_12] : memref<16x1024xbf16, #tpu.memory_space<vmem>>, vector<16x1024xbf16>
    tpu.vector_store %arg6[%c0_11, %c0_12], %15 {strides = array<i32>} : memref<16x1024xbf16, #tpu.memory_space<vmem>>, vector<16x1024xbf16>,
    return
  }
  func.func @transform_0(%arg0: i32) -> (i32, i32) {
    %c0_i32 = arith.constant 0 : i32
    %c0_i32_0 = arith.constant 0 : i32
    return %arg0, %c0_i32 : i32, i32
  }
  func.func @transform_1(%arg0: i32) -> (i32, i32) {
    %c0_i32 = arith.constant 0 : i32
    %c0_i32_0 = arith.constant 0 : i32
    %c0_i32_1 = arith.constant 0 : i32
    return %c0_i32, %c0_i32_0 : i32, i32
  }
  func.func @transform_2(%arg0: i32) -> (i32, i32) {
    %c0_i32 = arith.constant 0 : i32
    %c0_i32_0 = arith.constant 0 : i32
    %c0_i32_1 = arith.constant 0 : i32
    return %c0_i32, %c0_i32_0 : i32, i32
  }
  func.func @transform_3(%arg0: i32) -> (i32, i32) {
    %c0_i32 = arith.constant 0 : i32
    %c0_i32_0 = arith.constant 0 : i32
    %c0_i32_1 = arith.constant 0 : i32
    return %c0_i32, %c0_i32_0 : i32, i32
  }
  func.func @transform_4(%arg0: i32) -> (i32, i32) {
    %c0_i32 = arith.constant 0 : i32
    %c0_i32_0 = arith.constant 0 : i32
    %c0_i32_1 = arith.constant 0 : i32
    return %c0_i32, %c0_i32_0 : i32, i32
  }
  func.func @transform_5(%arg0: i32) -> (i32, i32) {
    %c0_i32 = arith.constant 0 : i32
    %c0_i32_0 = arith.constant 0 : i32
    return %arg0, %c0_i32 : i32, i32
  }
}

</mosaic_0001>

<llo_original>
// kernel: simple_t5_embed_forward.1
$region0: #{simple_t5_embed_forward.1}
  #allocation0 [shape = 'u32[]', space=smem, size = 0x4, offset = 0x4, fixed_abs, tag = 'smem constant byte address 0x4 - core index']
  #allocation1 [shape = 'u32[144,128]{1,0:T(1,128)}', space=vmem, size = 0x12000, scoped, tag = 'internal scratch']
  %s0 = inlined_call_operand.hbm [shape: f32[16,66], index: 0, kind: input, shape index: {}]
  %s1 = inlined_call_operand.hbm [shape: bf16[66,384], index: 1, kind: input, shape index: {}]
  %s2 = inlined_call_operand.vmem [shape: f32[1,384], index: 2, kind: input, shape index: {}]
  %s3 = inlined_call_operand.hbm [shape: bf16[384,1024], index: 3, kind: input, shape index: {}]
  %s4 = inlined_call_operand.vmem [shape: f32[1,1024], index: 4, kind: input, shape index: {}]
  %s5 = inlined_call_operand.hbm [shape: bf16[16,1024], index: 5, kind: output, shape index: {}]
  %s6 = sld [smem:[#allocation0]]
  $region42: #{simple_t5_embed_forward.1} parent=0
    _
  %s8 = ssub.s32 1, %s6
  %s9 = scalar_select 0, %s8, %s6
  $region1: #{simple_t5_embed_forward.1} parent=0
    #allocation2 [shape = 'u8[8192]{0}', space=vmem, size = 0x2000, scoped, tag = 'input window, operand 0, single buffered']
    #allocation3 [shape = 's32[1]{0}', space=sflag, size = 0x4, scoped, tag = 'scoped memory for simple_t5_embed_forward.1']
    #allocation4 [shape = 's32[1]{0}', space=sflag, size = 0x4, scoped, tag = 'scoped memory for simple_t5_embed_forward.1']
    #allocation5 [shape = 'u8[55296]{0}', space=vmem, size = 0xd800, scoped, tag = 'input window, operand 1, single buffered']
    #allocation6 [shape = 's32[1]{0}', space=sflag, size = 0x4, scoped, tag = 'scoped memory for simple_t5_embed_forward.1']
    #allocation7 [shape = 'u8[786432]{0}', space=vmem, size = 0xc0000, scoped, tag = 'input window, operand 3, single buffered']
    #allocation8 [shape = 'u8[32768]{0}', space=vmem, size = 0x8000, scoped, tag = 'output window, operand 0, single buffered']
    %10 = vsyncpa [#allocation3], 0
    %11 = vsyncpa [#allocation6], 0
    %12 = vsyncpa [#allocation4], 0
    // Predicated region
    $region2: #{simple_t5_embed_forward.1} parent=1 // pred_check
      _
    $region3: #{simple_t5_embed_forward.1} parent=1 // pred_check_branch
      %14 = sbr.rel (0) target = $region5
    $region4: #{simple_t5_embed_forward.1} parent=1 // pred_region
      %s16 = ssub.s32 256, 256
      %17 = vsyncadd [#allocation3], %s16
      %s18 = sshll.u32 [#allocation2], 4
      %s19 = int_to_ptr.vmem [resolvable:$true] %s18
      %24 = dma.hbm_to_vmem [thread:$0]  %s0, 256, %s19, [#allocation3], 128, 128, 8
    $region5: #{simple_t5_embed_forward.1} parent=1 // pred_fallthru
      _
    // Predicated region
    $region6: #{simple_t5_embed_forward.1} parent=1 // pred_check
      _
    $region7: #{simple_t5_embed_forward.1} parent=1 // pred_check_branch
      %26 = sbr.rel (0) target = $region9
    $region8: #{simple_t5_embed_forward.1} parent=1 // pred_region
      %s28 = ssub.s32 1728, 1728
      %29 = vsyncadd [#allocation6], %s28
      %s30 = sshll.u32 [#allocation5], 4
      %s31 = int_to_ptr.vmem [resolvable:$true] %s30
      %36 = dma.hbm_to_vmem [thread:$0]  %s1, 1728, %s31, [#allocation6], 192, 192, 12
    $region9: #{simple_t5_embed_forward.1} parent=1 // pred_fallthru
      _
    // Predicated region
    $region10: #{simple_t5_embed_forward.1} parent=1 // pred_check
      _
    $region11: #{simple_t5_embed_forward.1} parent=1 // pred_check_branch
      %38 = sbr.rel (0) target = $region13
    $region12: #{simple_t5_embed_forward.1} parent=1 // pred_region
      _
    $region13: #{simple_t5_embed_forward.1} parent=1 // pred_fallthru
      _
    // Predicated region
    $region14: #{simple_t5_embed_forward.1} parent=1 // pred_check
      _
    $region15: #{simple_t5_embed_forward.1} parent=1 // pred_check_branch
      %40 = sbr.rel (0) target = $region17
    $region16: #{simple_t5_embed_forward.1} parent=1 // pred_region
      %s42 = ssub.s32 24576, 24576
      %43 = vsyncadd [#allocation6], %s42
      %s44 = sshll.u32 [#allocation7], 4
      %s45 = int_to_ptr.vmem [resolvable:$true] %s44
      %50 = dma.hbm_to_vmem [thread:$0]  %s3, 24576, %s45, [#allocation6], 512, 512, 32
    $region17: #{simple_t5_embed_forward.1} parent=1 // pred_fallthru
      _
    // Predicated region
    $region18: #{simple_t5_embed_forward.1} parent=1 // pred_check
      _
    $region19: #{simple_t5_embed_forward.1} parent=1 // pred_check_branch
      %52 = sbr.rel (0) target = $region21
    $region20: #{simple_t5_embed_forward.1} parent=1 // pred_region
      _
    $region21: #{simple_t5_embed_forward.1} parent=1 // pred_fallthru
      _
    // Predicated region
    $region22: #{simple_t5_embed_forward.1} parent=1 // pred_check
      _
    $region23: #{simple_t5_embed_forward.1} parent=1 // pred_check_branch
      %54 = sbr.rel (0) target = $region25
    $region24: #{simple_t5_embed_forward.1} parent=1 // pred_region
      %55 = dma.done [#allocation3], 256
    $region25: #{simple_t5_embed_forward.1} parent=1 // pred_fallthru
      _
    // Predicated region
    $region26: #{simple_t5_embed_forward.1} parent=1 // pred_check
      _
    $region27: #{simple_t5_embed_forward.1} parent=1 // pred_check_branch
      %57 = sbr.rel (0) target = $region29
    $region28: #{simple_t5_embed_forward.1} parent=1 // pred_region
      %58 = dma.done [#allocation6], 1728
    $region29: #{simple_t5_embed_forward.1} parent=1 // pred_fallthru
      _
    // Predicated region
    $region30: #{simple_t5_embed_forward.1} parent=1 // pred_check
      _
    $region31: #{simple_t5_embed_forward.1} parent=1 // pred_check_branch
      %60 = sbr.rel (0) target = $region33
    $region32: #{simple_t5_embed_forward.1} parent=1 // pred_region
      %61 = dma.done [#allocation6], 24576
    $region33: #{simple_t5_embed_forward.1} parent=1 // pred_fallthru
      _
    %v63 = vld [vmem:[#allocation2] sm:$0xff]
    %v64 = vld [vmem:[#allocation2 + $0x8] sm:$0xff]
    %v65 = vpack.c.bf16 %v64, %v63
    %v66 = vld [vmem:[#allocation5] sm:$0xff]
    %v67 = vld [vmem:[#allocation5 + $0x8] sm:$0xf]
    %v68 = vld [vmem:[#allocation5 + $0xc] sm:$0xff]
    %v69 = vld [vmem:[#allocation5 + $0x14] sm:$0xf]
    %v70 = vld [vmem:[#allocation5 + $0x18] sm:$0xff]
    %v71 = vld [vmem:[#allocation5 + $0x20] sm:$0xf]
    %v72 = vld [vmem:[#allocation5 + $0x24] sm:$0xff]
    %v73 = vld [vmem:[#allocation5 + $0x2c] sm:$0xf]
    %v74 = vld [vmem:[#allocation5 + $0x30] sm:$0xff]
    %v75 = vld [vmem:[#allocation5 + $0x38] sm:$0xf]
    %v76 = vld [vmem:[#allocation5 + $0x3c] sm:$0xff]
    %v77 = vld [vmem:[#allocation5 + $0x44] sm:$0xf]
    %v78 = vld [vmem:[#allocation5 + $0x48] sm:$0xff]
    %v79 = vld [vmem:[#allocation5 + $0x50] sm:$0xf]
    %v80 = vld [vmem:[#allocation5 + $0x54] sm:$0xff]
    %v81 = vld [vmem:[#allocation5 + $0x5c] sm:$0xf]
    %v82 = vld [vmem:[#allocation5 + $0x60] sm:$0x11]
    %v83 = vld [vmem:[#allocation5 + $0x68] sm:$0x1]
    %v84 = vld [vmem:[%s2] sm:$0x7]
    %v86 = vlaneseq
    %v87 = vshrl.u32 %v86, 7
    %v88 = vsub.s32 0, %v87
    %v89 = vrot.slane %v84, %v88
    %v90 = vlaneseq
    %v91 = vshrl.u32 %v90, 7
    %v92 = vsub.s32 1, %v91
    %v93 = vrot.slane %v84, %v92
    %v94 = vlaneseq
    %v95 = vshrl.u32 %v94, 7
    %v96 = vsub.s32 2, %v95
    %v97 = vrot.slane %v84, %v96
    %v119 = vunpack.c.l.b16 %v66
    %v120 = vunpack.c.h.b16 %v66
    %v121 = vunpack.c.l.b16 %v67
    %v122 = vunpack.c.l.b16 %v68
    %v123 = vunpack.c.h.b16 %v68
    %v124 = vunpack.c.l.b16 %v69
    %v125 = vunpack.c.l.b16 %v70
    %v126 = vunpack.c.h.b16 %v70
    %v127 = vunpack.c.l.b16 %v71
    %v128 = vunpack.c.l.b16 %v72
    %v129 = vunpack.c.h.b16 %v72
    %v130 = vunpack.c.l.b16 %v73
    %v131 = vunpack.c.l.b16 %v74
    %v132 = vunpack.c.h.b16 %v74
    %v133 = vunpack.c.l.b16 %v75
    %v134 = vunpack.c.l.b16 %v76
    %v135 = vunpack.c.h.b16 %v76
    %v136 = vunpack.c.l.b16 %v77
    %v137 = vunpack.c.l.b16 %v78
    %v138 = vunpack.c.h.b16 %v78
    %v139 = vunpack.c.l.b16 %v79
    %v140 = vunpack.c.l.b16 %v80
    %v141 = vunpack.c.h.b16 %v80
    %v142 = vunpack.c.l.b16 %v81
    %v143 = vunpack.c.l.b16 %v82
    %v144 = vunpack.c.h.b16 %v82
    %v145 = vunpack.c.l.b16 %v83
    %v146 = vpack.c.b16 %v122, %v119
    %v147 = vpack.c.b16 %v123, %v120
    %v148 = vpack.c.b16 %v124, %v121
    %v149 = vpack.c.b16 %v128, %v125
    %v150 = vpack.c.b16 %v129, %v126
    %v151 = vpack.c.b16 %v130, %v127
    %v152 = vpack.c.b16 %v134, %v131
    %v153 = vpack.c.b16 %v135, %v132
    %v154 = vpack.c.b16 %v136, %v133
    %v155 = vpack.c.b16 %v140, %v137
    %v156 = vpack.c.b16 %v141, %v138
    %v157 = vpack.c.b16 %v142, %v139
    %v158 = vpack.c.b16 %v143, %v143
    %v159 = vpack.c.b16 %v144, %v144
    %v160 = vpack.c.b16 %v145, %v145
    %vm173 = vcmask 539648
    %v175 = vsel %vm173, %v65, 0
    %vm177 = vcmask 1040384
    %v179 = vsel %vm177, %v158, 0
    %v182 = vsel %vm177, %v159, 0
    %v185 = vsel %vm177, %v160, 0
    %187 = vmatprep.subr.bf16.mxu0 %v147
    %188 = vmatpush1.bf16.msra.mxu0 %v146
    %189 = vmatprep.subr.bf16.mxu0 %v150
    %190 = vmatpush1.bf16.msra.mxu0 %v149
    %191 = vmatprep.subr.bf16.mxu0 %v153
    %192 = vmatpush1.bf16.msra.mxu0 %v152
    %193 = vmatprep.subr.bf16.mxu0 %v156
    %194 = vmatpush1.bf16.msra.mxu0 %v155
    %195 = vmatprep.subr.bf16.mxu0 %v182
    %196 = vmatpush1.bf16.msra.mxu0 %v179
    %197 = vmatprep.subr.bf16.mxu0 0
    %198 = vmatpush1.bf16.msra.mxu0 0
    %199 = vmatprep.subr.bf16.mxu0 0
    %200 = vmatpush1.bf16.msra.mxu0 0
    %201 = vmatprep.subr.bf16.mxu0 0
    %202 = vmatpush1.bf16.msra.mxu0 0
    %203 = vmatprep.subr.bf16.mxu0 0
    %204 = vmatpush1.bf16.msra.mxu0 0
    %205 = vmatprep.subr.bf16.mxu0 0
    %206 = vmatpush1.bf16.msra.mxu0 0
    %207 = vmatprep.subr.bf16.mxu0 0
    %208 = vmatpush1.bf16.msra.mxu0 0
    %209 = vmatprep.subr.bf16.mxu0 0
    %210 = vmatpush1.bf16.msra.mxu0 0
    %211 = vmatprep.subr.bf16.mxu0 0
    %212 = vmatpush1.bf16.msra.mxu0 0
    %213 = vmatprep.subr.bf16.mxu0 0
    %214 = vmatpush1.bf16.msra.mxu0 0
    %215 = vmatprep.subr.bf16.mxu0 0
    %216 = vmatpush1.bf16.msra.mxu0 0
    %217 = vmatprep.subr.bf16.mxu0 0
    %218 = vmatpush1.bf16.msra.mxu0 0
    %219 = vmatprep.mubr.bf16.mxu0 0
    %220 = vmatmul.mubr.bf16.gmra.mrb[0].mxu0 %v175
    %v221 = vpop.f32.mrb[0].mxu0
    %v222 = vadd.f32 %v89, %v221
    %v223 = vpop.f32.mrb[0].mxu0
    %v224 = vadd.f32 %v93, %v223
    %v225 = vpop.f32.mrb[0].mxu0
    %v226 = vadd.f32 %v89, %v225
    %v227 = vpop.f32.mrb[0].mxu0
    %v228 = vadd.f32 %v93, %v227
    %229 = vdwg.mxu0
    %230 = vmatprep.subr.bf16.mxu0 0
    %231 = vmatpush1.bf16.msra.mxu0 %v148
    %232 = vmatprep.subr.bf16.mxu0 0
    %233 = vmatpush1.bf16.msra.mxu0 %v151
    %234 = vmatprep.subr.bf16.mxu0 0
    %235 = vmatpush1.bf16.msra.mxu0 %v154
    %236 = vmatprep.subr.bf16.mxu0 0
    %237 = vmatpush1.bf16.msra.mxu0 %v157
    %238 = vmatprep.subr.bf16.mxu0 0
    %239 = vmatpush1.bf16.msra.mxu0 %v185
    %240 = vmatprep.subr.bf16.mxu0 0
    %241 = vmatpush1.bf16.msra.mxu0 0
    %242 = vmatprep.subr.bf16.mxu0 0
    %243 = vmatpush1.bf16.msra.mxu0 0
    %244 = vmatprep.subr.bf16.mxu0 0
    %245 = vmatpush1.bf16.msra.mxu0 0
    %246 = vmatprep.subr.bf16.mxu0 0
    %247 = vmatpush1.bf16.msra.mxu0 0
    %248 = vmatprep.subr.bf16.mxu0 0
    %249 = vmatpush1.bf16.msra.mxu0 0
    %250 = vmatprep.subr.bf16.mxu0 0
    %251 = vmatpush1.bf16.msra.mxu0 0
    %252 = vmatprep.subr.bf16.mxu0 0
    %253 = vmatpush1.bf16.msra.mxu0 0
    %254 = vmatprep.subr.bf16.mxu0 0
    %255 = vmatpush1.bf16.msra.mxu0 0
    %256 = vmatprep.subr.bf16.mxu0 0
    %257 = vmatpush1.bf16.msra.mxu0 0
    %258 = vmatprep.subr.bf16.mxu0 0
    %259 = vmatpush1.bf16.msra.mxu0 0
    %260 = vmatprep.subr.bf16.mxu0 0
    %261 = vmatpush1.bf16.msra.mxu0 0
    %262 = vmatprep.mubr.bf16.mxu0 0
    %263 = vmatmul.mubr.bf16.gmra.mrb[0].mxu0 %v175
    %v264 = vpop.f32.mrb[0].mxu0
    %v265 = vadd.f32 %v97, %v264
    %v266 = vpop.f32.mrb[0].mxu0
    %v267 = vpop.f32.mrb[0].mxu0
    %v268 = vadd.f32 %v97, %v267
    %v269 = vpop.f32.mrb[0].mxu0
    %270 = vdwg.mxu0
    %v271 = vmax.f32 %v222, 0.0
    %v272 = vmax.f32 %v224, 0.0
    %v273 = vmax.f32 %v265, 0.0
    %v274 = vmax.f32 %v226, 0.0
    %v275 = vmax.f32 %v228, 0.0
    %v276 = vmax.f32 %v268, 0.0
    %v277 = vpack.c.bf16 %v274, %v271
    %v278 = vpack.c.bf16 %v275, %v272
    %v279 = vpack.c.bf16 %v276, %v273
    %v280 = vld [vmem:[#allocation7] sm:$0xff]
    %v281 = vld [vmem:[#allocation7 + $0x8] sm:$0xff]
    %v282 = vld [vmem:[#allocation7 + $0x10] sm:$0xff]
    %v283 = vld [vmem:[#allocation7 + $0x18] sm:$0xff]
    %v284 = vld [vmem:[#allocation7 + $0x20] sm:$0xff]
    %v285 = vld [vmem:[#allocation7 + $0x28] sm:$0xff]
    %v286 = vld [vmem:[#allocation7 + $0x30] sm:$0xff]
    %v287 = vld [vmem:[#allocation7 + $0x38] sm:$0xff]
    %v288 = vld [vmem:[#allocation7 + $0x40] sm:$0xff]
    %v289 = vld [vmem:[#allocation7 + $0x48] sm:$0xff]
    %v290 = vld [vmem:[#allocation7 + $0x50] sm:$0xff]
    %v291 = vld [vmem:[#allocation7 + $0x58] sm:$0xff]
    %v292 = vld [vmem:[#allocation7 + $0x60] sm:$0xff]
    %v293 = vld [vmem:[#allocation7 + $0x68] sm:$0xff]
    %v294 = vld [vmem:[#allocation7 + $0x70] sm:$0xff]
    %v295 = vld [vmem:[#allocation7 + $0x78] sm:$0xff]
    %v296 = vld [vmem:[#allocation7 + $0x80] sm:$0xff]
    %v297 = vld [vmem:[#allocation7 + $0x88] sm:$0xff]
    %v298 = vld [vmem:[#allocation7 + $0x90] sm:$0xff]
    %v299 = vld [vmem:[#allocation7 + $0x98] sm:$0xff]
    %v300 = vld [vmem:[#allocation7 + $0xa0] sm:$0xff]
    %v301 = vld [vmem:[#allocation7 + $0xa8] sm:$0xff]
    %v302 = vld [vmem:[#allocation7 + $0xb0] sm:$0xff]
    %v303 = vld [vmem:[#allocation7 + $0xb8] sm:$0xff]
    %v304 = vld [vmem:[#allocation7 + $0xc0] sm:$0xff]
    %v305 = vld [vmem:[#allocation7 + $0xc8] sm:$0xff]
    %v306 = vld [vmem:[#allocation7 + $0xd0] sm:$0xff]
    %v307 = vld [vmem:[#allocation7 + $0xd8] sm:$0xff]
    %v308 = vld [vmem:[#allocation7 + $0xe0] sm:$0xff]
    %v309 = vld [vmem:[#allocation7 + $0xe8] sm:$0xff]
    %v310 = vld [vmem:[#allocation7 + $0xf0] sm:$0xff]
    %v311 = vld [vmem:[#allocation7 + $0xf8] sm:$0xff]
    %v312 = vld [vmem:[#allocation7 + $0x100] sm:$0xff]
    %v313 = vld [vmem:[#allocation7 + $0x108] sm:$0xff]
    %v314 = vld [vmem:[#allocation7 + $0x110] sm:$0xff]
    %v315 = vld [vmem:[#allocation7 + $0x118] sm:$0xff]
    %v316 = vld [vmem:[#allocation7 + $0x120] sm:$0xff]
    %v317 = vld [vmem:[#allocation7 + $0x128] sm:$0xff]
    %v318 = vld [vmem:[#allocation7 + $0x130] sm:$0xff]
    %v319 = vld [vmem:[#allocation7 + $0x138] sm:$0xff]
    %v320 = vld [vmem:[#allocation7 + $0x140] sm:$0xff]
    %v321 = vld [vmem:[#allocation7 + $0x148] sm:$0xff]
    %v322 = vld [vmem:[#allocation7 + $0x150] sm:$0xff]
    %v323 = vld [vmem:[#allocation7 + $0x158] sm:$0xff]
    %v324 = vld [vmem:[#allocation7 + $0x160] sm:$0xff]
    %v325 = vld [vmem:[#allocation7 + $0x168] sm:$0xff]
    %v326 = vld [vmem:[#allocation7 + $0x170] sm:$0xff]
    %v327 = vld [vmem:[#allocation7 + $0x178] sm:$0xff]
    %v328 = vld [vmem:[#allocation7 + $0x180] sm:$0xff]
    %v329 = vld [vmem:[#allocation7 + $0x188] sm:$0xff]
    %v330 = vld [vmem:[#allocation7 + $0x190] sm:$0xff]
    %v331 = vld [vmem:[#allocation7 + $0x198] sm:$0xff]
    %v332 = vld [vmem:[#allocation7 + $0x1a0] sm:$0xff]
    %v333 = vld [vmem:[#allocation7 + $0x1a8] sm:$0xff]
    %v334 = vld [vmem:[#allocation7 + $0x1b0] sm:$0xff]
    %v335 = vld [vmem:[#allocation7 + $0x1b8] sm:$0xff]
    %v336 = vld [vmem:[#allocation7 + $0x1c0] sm:$0xff]
    %v337 = vld [vmem:[#allocation7 + $0x1c8] sm:$0xff]
    %v338 = vld [vmem:[#allocation7 + $0x1d0] sm:$0xff]
    %v339 = vld [vmem:[#allocation7 + $0x1d8] sm:$0xff]
    %v340 = vld [vmem:[#allocation7 + $0x1e0] sm:$0xff]
    %v341 = vld [vmem:[#allocation7 + $0x1e8] sm:$0xff]
    %v342 = vld [vmem:[#allocation7 + $0x1f0] sm:$0xff]
    %v343 = vld [vmem:[#allocation7 + $0x1f8] sm:$0xff]
    %v344 = vld [vmem:[#allocation7 + $0x200] sm:$0xff]
    %v345 = vld [vmem:[#allocation7 + $0x208] sm:$0xff]
    %v346 = vld [vmem:[#allocation7 + $0x210] sm:$0xff]
    %v347 = vld [vmem:[#allocation7 + $0x218] sm:$0xff]
    %v348 = vld [vmem:[#allocation7 + $0x220] sm:$0xff]
    %v349 = vld [vmem:[#allocation7 + $0x228] sm:$0xff]
    %v350 = vld [vmem:[#allocation7 + $0x230] sm:$0xff]
    %v351 = vld [vmem:[#allocation7 + $0x238] sm:$0xff]
    %v352 = vld [vmem:[#allocation7 + $0x240] sm:$0xff]
    %v353 = vld [vmem:[#allocation7 + $0x248] sm:$0xff]
    %v354 = vld [vmem:[#allocation7 + $0x250] sm:$0xff]
    %v355 = vld [vmem:[#allocation7 + $0x258] sm:$0xff]
    %v356 = vld [vmem:[#allocation7 + $0x260] sm:$0xff]
    %v357 = vld [vmem:[#allocation7 + $0x268] sm:$0xff]
    %v358 = vld [vmem:[#allocation7 + $0x270] sm:$0xff]
    %v359 = vld [vmem:[#allocation7 + $0x278] sm:$0xff]
    %v360 = vld [vmem:[#allocation7 + $0x280] sm:$0xff]
    %v361 = vld [vmem:[#allocation7 + $0x288] sm:$0xff]
    %v362 = vld [vmem:[#allocation7 + $0x290] sm:$0xff]
    %v363 = vld [vmem:[#allocation7 + $0x298] sm:$0xff]
    %v364 = vld [vmem:[#allocation7 + $0x2a0] sm:$0xff]
    %v365 = vld [vmem:[#allocation7 + $0x2a8] sm:$0xff]
    %v366 = vld [vmem:[#allocation7 + $0x2b0] sm:$0xff]
    %v367 = vld [vmem:[#allocation7 + $0x2b8] sm:$0xff]
    %v368 = vld [vmem:[#allocation7 + $0x2c0] sm:$0xff]
    %v369 = vld [vmem:[#allocation7 + $0x2c8] sm:$0xff]
    %v370 = vld [vmem:[#allocation7 + $0x2d0] sm:$0xff]
    %v371 = vld [vmem:[#allocation7 + $0x2d8] sm:$0xff]
    %v372 = vld [vmem:[#allocation7 + $0x2e0] sm:$0xff]
    %v373 = vld [vmem:[#allocation7 + $0x2e8] sm:$0xff]
    %v374 = vld [vmem:[#allocation7 + $0x2f0] sm:$0xff]
    %v375 = vld [vmem:[#allocation7 + $0x2f8] sm:$0xff]
    %v376 = vld [vmem:[#allocation7 + $0x300] sm:$0xff]
    %v377 = vld [vmem:[#allocation7 + $0x308] sm:$0xff]
    %v378 = vld [vmem:[#allocation7 + $0x310] sm:$0xff]
    %v379 = vld [vmem:[#allocation7 + $0x318] sm:$0xff]
    %v380 = vld [vmem:[#allocation7 + $0x320] sm:$0xff]
    %v381 = vld [vmem:[#allocation7 + $0x328] sm:$0xff]
    %v382 = vld [vmem:[#allocation7 + $0x330] sm:$0xff]
    %v383 = vld [vmem:[#allocation7 + $0x338] sm:$0xff]
    %v384 = vld [vmem:[#allocation7 + $0x340] sm:$0xff]
    %v385 = vld [vmem:[#allocation7 + $0x348] sm:$0xff]
    %v386 = vld [vmem:[#allocation7 + $0x350] sm:$0xff]
    %v387 = vld [vmem:[#allocation7 + $0x358] sm:$0xff]
    %v388 = vld [vmem:[#allocation7 + $0x360] sm:$0xff]
    %v389 = vld [vmem:[#allocation7 + $0x368] sm:$0xff]
    %v390 = vld [vmem:[#allocation7 + $0x370] sm:$0xff]
    %v391 = vld [vmem:[#allocation7 + $0x378] sm:$0xff]
    %v392 = vld [vmem:[#allocation7 + $0x380] sm:$0xff]
    %v393 = vld [vmem:[#allocation7 + $0x388] sm:$0xff]
    %v394 = vld [vmem:[#allocation7 + $0x390] sm:$0xff]
    %v395 = vld [vmem:[#allocation7 + $0x398] sm:$0xff]
    %v396 = vld [vmem:[#allocation7 + $0x3a0] sm:$0xff]
    %v397 = vld [vmem:[#allocation7 + $0x3a8] sm:$0xff]
    %v398 = vld [vmem:[#allocation7 + $0x3b0] sm:$0xff]
    %v399 = vld [vmem:[#allocation7 + $0x3b8] sm:$0xff]
    %v400 = vld [vmem:[#allocation7 + $0x3c0] sm:$0xff]
    %v401 = vld [vmem:[#allocation7 + $0x3c8] sm:$0xff]
    %v402 = vld [vmem:[#allocation7 + $0x3d0] sm:$0xff]
    %v403 = vld [vmem:[#allocation7 + $0x3d8] sm:$0xff]
    %v404 = vld [vmem:[#allocation7 + $0x3e0] sm:$0xff]
    %v405 = vld [vmem:[#allocation7 + $0x3e8] sm:$0xff]
    %v406 = vld [vmem:[#allocation7 + $0x3f0] sm:$0xff]
    %v407 = vld [vmem:[#allocation7 + $0x3f8] sm:$0xff]
    %v408 = vld [vmem:[#allocation7 + $0x400] sm:$0xff]
    %v409 = vld [vmem:[#allocation7 + $0x408] sm:$0xff]
    %v410 = vld [vmem:[#allocation7 + $0x410] sm:$0xff]
    %v411 = vld [vmem:[#allocation7 + $0x418] sm:$0xff]
    %v412 = vld [vmem:[#allocation7 + $0x420] sm:$0xff]
    %v413 = vld [vmem:[#allocation7 + $0x428] sm:$0xff]
    %v414 = vld [vmem:[#allocation7 + $0x430] sm:$0xff]
    %v415 = vld [vmem:[#allocation7 + $0x438] sm:$0xff]
    %v416 = vld [vmem:[#allocation7 + $0x440] sm:$0xff]
    %v417 = vld [vmem:[#allocation7 + $0x448] sm:$0xff]
    %v418 = vld [vmem:[#allocation7 + $0x450] sm:$0xff]
    %v419 = vld [vmem:[#allocation7 + $0x458] sm:$0xff]
    %v420 = vld [vmem:[#allocation7 + $0x460] sm:$0xff]
    %v421 = vld [vmem:[#allocation7 + $0x468] sm:$0xff]
    %v422 = vld [vmem:[#allocation7 + $0x470] sm:$0xff]
    %v423 = vld [vmem:[#allocation7 + $0x478] sm:$0xff]
    %v424 = vld [vmem:[#allocation7 + $0x480] sm:$0xff]
    %v425 = vld [vmem:[#allocation7 + $0x488] sm:$0xff]
    %v426 = vld [vmem:[#allocation7 + $0x490] sm:$0xff]
    %v427 = vld [vmem:[#allocation7 + $0x498] sm:$0xff]
    %v428 = vld [vmem:[#allocation7 + $0x4a0] sm:$0xff]
    %v429 = vld [vmem:[#allocation7 + $0x4a8] sm:$0xff]
    %v430 = vld [vmem:[#allocation7 + $0x4b0] sm:$0xff]
    %v431 = vld [vmem:[#allocation7 + $0x4b8] sm:$0xff]
    %v432 = vld [vmem:[#allocation7 + $0x4c0] sm:$0xff]
    %v433 = vld [vmem:[#allocation7 + $0x4c8] sm:$0xff]
    %v434 = vld [vmem:[#allocation7 + $0x4d0] sm:$0xff]
    %v435 = vld [vmem:[#allocation7 + $0x4d8] sm:$0xff]
    %v436 = vld [vmem:[#allocation7 + $0x4e0] sm:$0xff]
    %v437 = vld [vmem:[#allocation7 + $0x4e8] sm:$0xff]
    %v438 = vld [vmem:[#allocation7 + $0x4f0] sm:$0xff]
    %v439 = vld [vmem:[#allocation7 + $0x4f8] sm:$0xff]
    %v440 = vld [vmem:[#allocation7 + $0x500] sm:$0xff]
    %v441 = vld [vmem:[#allocation7 + $0x508] sm:$0xff]
    %v442 = vld [vmem:[#allocation7 + $0x510] sm:$0xff]
    %v443 = vld [vmem:[#allocation7 + $0x518] sm:$0xff]
    %v444 = vld [vmem:[#allocation7 + $0x520] sm:$0xff]
    %v445 = vld [vmem:[#allocation7 + $0x528] sm:$0xff]
    %v446 = vld [vmem:[#allocation7 + $0x530] sm:$0xff]
    %v447 = vld [vmem:[#allocation7 + $0x538] sm:$0xff]
    %v448 = vld [vmem:[#allocation7 + $0x540] sm:$0xff]
    %v449 = vld [vmem:[#allocation7 + $0x548] sm:$0xff]
    %v450 = vld [vmem:[#allocation7 + $0x550] sm:$0xff]
    %v451 = vld [vmem:[#allocation7 + $0x558] sm:$0xff]
    %v452 = vld [vmem:[#allocation7 + $0x560] sm:$0xff]
    %v453 = vld [vmem:[#allocation7 + $0x568] sm:$0xff]
    %v454 = vld [vmem:[#allocation7 + $0x570] sm:$0xff]
    %v455 = vld [vmem:[#allocation7 + $0x578] sm:$0xff]
    %v456 = vld [vmem:[#allocation7 + $0x580] sm:$0xff]
    %v457 = vld [vmem:[#allocation7 + $0x588] sm:$0xff]
    %v458 = vld [vmem:[#allocation7 + $0x590] sm:$0xff]
    %v459 = vld [vmem:[#allocation7 + $0x598] sm:$0xff]
    %v460 = vld [vmem:[#allocation7 + $0x5a0] sm:$0xff]
    %v461 = vld [vmem:[#allocation7 + $0x5a8] sm:$0xff]
    %v462 = vld [vmem:[#allocation7 + $0x5b0] sm:$0xff]
    %v463 = vld [vmem:[#allocation7 + $0x5b8] sm:$0xff]
    %v464 = vld [vmem:[#allocation7 + $0x5c0] sm:$0xff]
    %v465 = vld [vmem:[#allocation7 + $0x5c8] sm:$0xff]
    %v466 = vld [vmem:[#allocation7 + $0x5d0] sm:$0xff]
    %v467 = vld [vmem:[#allocation7 + $0x5d8] sm:$0xff]
    %v468 = vld [vmem:[#allocation7 + $0x5e0] sm:$0xff]
    %v469 = vld [vmem:[#allocation7 + $0x5e8] sm:$0xff]
    %v470 = vld [vmem:[#allocation7 + $0x5f0] sm:$0xff]
    %v471 = vld [vmem:[#allocation7 + $0x5f8] sm:$0xff]
    %v472 = vld [vmem:[%s4] sm:$0xff]
    %v474 = vlaneseq
    %v475 = vshrl.u32 %v474, 7
    %v476 = vsub.s32 0, %v475
    %v477 = vrot.slane %v472, %v476
    %v478 = vlaneseq
    %v479 = vshrl.u32 %v478, 7
    %v480 = vsub.s32 1, %v479
    %v481 = vrot.slane %v472, %v480
    %v482 = vlaneseq
    %v483 = vshrl.u32 %v482, 7
    %v484 = vsub.s32 2, %v483
    %v485 = vrot.slane %v472, %v484
    %v486 = vlaneseq
    %v487 = vshrl.u32 %v486, 7
    %v488 = vsub.s32 3, %v487
    %v489 = vrot.slane %v472, %v488
    %v490 = vlaneseq
    %v491 = vshrl.u32 %v490, 7
    %v492 = vsub.s32 4, %v491
    %v493 = vrot.slane %v472, %v492
    %v494 = vlaneseq
    %v495 = vshrl.u32 %v494, 7
    %v496 = vsub.s32 5, %v495
    %v497 = vrot.slane %v472, %v496
    %v498 = vlaneseq
    %v499 = vshrl.u32 %v498, 7
    %v500 = vsub.s32 6, %v499
    %v501 = vrot.slane %v472, %v500
    %v502 = vlaneseq
    %v503 = vshrl.u32 %v502, 7
    %v504 = vsub.s32 7, %v503
    %v505 = vrot.slane %v472, %v504
    %v706 = vunpack.c.l.b16 %v280
    %v707 = vunpack.c.h.b16 %v280
    %v708 = vunpack.c.l.b16 %v281
    %v709 = vunpack.c.h.b16 %v281
    %v710 = vunpack.c.l.b16 %v282
    %v711 = vunpack.c.h.b16 %v282
    %v712 = vunpack.c.l.b16 %v283
    %v713 = vunpack.c.h.b16 %v283
    %v714 = vunpack.c.l.b16 %v284
    %v715 = vunpack.c.h.b16 %v284
    %v716 = vunpack.c.l.b16 %v285
    %v717 = vunpack.c.h.b16 %v285
    %v718 = vunpack.c.l.b16 %v286
    %v719 = vunpack.c.h.b16 %v286
    %v720 = vunpack.c.l.b16 %v287
    %v721 = vunpack.c.h.b16 %v287
    %v722 = vunpack.c.l.b16 %v288
    %v723 = vunpack.c.h.b16 %v288
    %v724 = vunpack.c.l.b16 %v289
    %v725 = vunpack.c.h.b16 %v289
    %v726 = vunpack.c.l.b16 %v290
    %v727 = vunpack.c.h.b16 %v290
    %v728 = vunpack.c.l.b16 %v291
    %v729 = vunpack.c.h.b16 %v291
    %v730 = vunpack.c.l.b16 %v292
    %v731 = vunpack.c.h.b16 %v292
    %v732 = vunpack.c.l.b16 %v293
    %v733 = vunpack.c.h.b16 %v293
    %v734 = vunpack.c.l.b16 %v294
    %v735 = vunpack.c.h.b16 %v294
    %v736 = vunpack.c.l.b16 %v295
    %v737 = vunpack.c.h.b16 %v295
    %v738 = vunpack.c.l.b16 %v296
    %v739 = vunpack.c.h.b16 %v296
    %v740 = vunpack.c.l.b16 %v297
    %v741 = vunpack.c.h.b16 %v297
    %v742 = vunpack.c.l.b16 %v298
    %v743 = vunpack.c.h.b16 %v298
    %v744 = vunpack.c.l.b16 %v299
    %v745 = vunpack.c.h.b16 %v299
    %v746 = vunpack.c.l.b16 %v300
    %v747 = vunpack.c.h.b16 %v300
    %v748 = vunpack.c.l.b16 %v301
    %v749 = vunpack.c.h.b16 %v301
    %v750 = vunpack.c.l.b16 %v302
    %v751 = vunpack.c.h.b16 %v302
    %v752 = vunpack.c.l.b16 %v303
    %v753 = vunpack.c.h.b16 %v303
    %v754 = vunpack.c.l.b16 %v304
    %v755 = vunpack.c.h.b16 %v304
    %v756 = vunpack.c.l.b16 %v305
    %v757 = vunpack.c.h.b16 %v305
    %v758 = vunpack.c.l.b16 %v306
    %v759 = vunpack.c.h.b16 %v306
    %v760 = vunpack.c.l.b16 %v307
    %v761 = vunpack.c.h.b16 %v307
    %v762 = vunpack.c.l.b16 %v308
    %v763 = vunpack.c.h.b16 %v308
    %v764 = vunpack.c.l.b16 %v309
    %v765 = vunpack.c.h.b16 %v309
    %v766 = vunpack.c.l.b16 %v310
    %v767 = vunpack.c.h.b16 %v310
    %v768 = vunpack.c.l.b16 %v311
    %v769 = vunpack.c.h.b16 %v311
    %v770 = vunpack.c.l.b16 %v312
    %v771 = vunpack.c.h.b16 %v312
    %v772 = vunpack.c.l.b16 %v313
    %v773 = vunpack.c.h.b16 %v313
    %v774 = vunpack.c.l.b16 %v314
    %v775 = vunpack.c.h.b16 %v314
    %v776 = vunpack.c.l.b16 %v315
    %v777 = vunpack.c.h.b16 %v315
    %v778 = vunpack.c.l.b16 %v316
    %v779 = vunpack.c.h.b16 %v316
    %v780 = vunpack.c.l.b16 %v317
    %v781 = vunpack.c.h.b16 %v317
    %v782 = vunpack.c.l.b16 %v318
    %v783 = vunpack.c.h.b16 %v318
    %v784 = vunpack.c.l.b16 %v319
    %v785 = vunpack.c.h.b16 %v319
    %v786 = vunpack.c.l.b16 %v320
    %v787 = vunpack.c.h.b16 %v320
    %v788 = vunpack.c.l.b16 %v321
    %v789 = vunpack.c.h.b16 %v321
    %v790 = vunpack.c.l.b16 %v322
    %v791 = vunpack.c.h.b16 %v322
    %v792 = vunpack.c.l.b16 %v323
    %v793 = vunpack.c.h.b16 %v323
    %v794 = vunpack.c.l.b16 %v324
    %v795 = vunpack.c.h.b16 %v324
    %v796 = vunpack.c.l.b16 %v325
    %v797 = vunpack.c.h.b16 %v325
    %v798 = vunpack.c.l.b16 %v326
    %v799 = vunpack.c.h.b16 %v326
    %v800 = vunpack.c.l.b16 %v327
    %v801 = vunpack.c.h.b16 %v327
    %v802 = vunpack.c.l.b16 %v328
    %v803 = vunpack.c.h.b16 %v328
    %v804 = vunpack.c.l.b16 %v329
    %v805 = vunpack.c.h.b16 %v329
    %v806 = vunpack.c.l.b16 %v330
    %v807 = vunpack.c.h.b16 %v330
    %v808 = vunpack.c.l.b16 %v331
    %v809 = vunpack.c.h.b16 %v331
    %v810 = vunpack.c.l.b16 %v332
    %v811 = vunpack.c.h.b16 %v332
    %v812 = vunpack.c.l.b16 %v333
    %v813 = vunpack.c.h.b16 %v333
    %v814 = vunpack.c.l.b16 %v334
    %v815 = vunpack.c.h.b16 %v334
    %v816 = vunpack.c.l.b16 %v335
    %v817 = vunpack.c.h.b16 %v335
    %v818 = vunpack.c.l.b16 %v336
    %v819 = vunpack.c.h.b16 %v336
    %v820 = vunpack.c.l.b16 %v337
    %v821 = vunpack.c.h.b16 %v337
    %v822 = vunpack.c.l.b16 %v338
    %v823 = vunpack.c.h.b16 %v338
    %v824 = vunpack.c.l.b16 %v339
    %v825 = vunpack.c.h.b16 %v339
    %v826 = vunpack.c.l.b16 %v340
    %v827 = vunpack.c.h.b16 %v340
    %v828 = vunpack.c.l.b16 %v341
    %v829 = vunpack.c.h.b16 %v341
    %v830 = vunpack.c.l.b16 %v342
    %v831 = vunpack.c.h.b16 %v342
    %v832 = vunpack.c.l.b16 %v343
    %v833 = vunpack.c.h.b16 %v343
    %v834 = vunpack.c.l.b16 %v344
    %v835 = vunpack.c.h.b16 %v344
    %v836 = vunpack.c.l.b16 %v345
    %v837 = vunpack.c.h.b16 %v345
    %v838 = vunpack.c.l.b16 %v346
    %v839 = vunpack.c.h.b16 %v346
    %v840 = vunpack.c.l.b16 %v347
    %v841 = vunpack.c.h.b16 %v347
    %v842 = vunpack.c.l.b16 %v348
    %v843 = vunpack.c.h.b16 %v348
    %v844 = vunpack.c.l.b16 %v349
    %v845 = vunpack.c.h.b16 %v349
    %v846 = vunpack.c.l.b16 %v350
    %v847 = vunpack.c.h.b16 %v350
    %v848 = vunpack.c.l.b16 %v351
    %v849 = vunpack.c.h.b16 %v351
    %v850 = vunpack.c.l.b16 %v352
    %v851 = vunpack.c.h.b16 %v352
    %v852 = vunpack.c.l.b16 %v353
    %v853 = vunpack.c.h.b16 %v353
    %v854 = vunpack.c.l.b16 %v354
    %v855 = vunpack.c.h.b16 %v354
    %v856 = vunpack.c.l.b16 %v355
    %v857 = vunpack.c.h.b16 %v355
    %v858 = vunpack.c.l.b16 %v356
    %v859 = vunpack.c.h.b16 %v356
    %v860 = vunpack.c.l.b16 %v357
    %v861 = vunpack.c.h.b16 %v357
    %v862 = vunpack.c.l.b16 %v358
    %v863 = vunpack.c.h.b16 %v358
    %v864 = vunpack.c.l.b16 %v359
    %v865 = vunpack.c.h.b16 %v359
    %v866 = vunpack.c.l.b16 %v360
    %v867 = vunpack.c.h.b16 %v360
    %v868 = vunpack.c.l.b16 %v361
    %v869 = vunpack.c.h.b16 %v361
    %v870 = vunpack.c.l.b16 %v362
    %v871 = vunpack.c.h.b16 %v362
    %v872 = vunpack.c.l.b16 %v363
    %v873 = vunpack.c.h.b16 %v363
    %v874 = vunpack.c.l.b16 %v364
    %v875 = vunpack.c.h.b16 %v364
    %v876 = vunpack.c.l.b16 %v365
    %v877 = vunpack.c.h.b16 %v365
    %v878 = vunpack.c.l.b16 %v366
    %v879 = vunpack.c.h.b16 %v366
    %v880 = vunpack.c.l.b16 %v367
    %v881 = vunpack.c.h.b16 %v367
    %v882 = vunpack.c.l.b16 %v368
    %v883 = vunpack.c.h.b16 %v368
    %v884 = vunpack.c.l.b16 %v369
    %v885 = vunpack.c.h.b16 %v369
    %v886 = vunpack.c.l.b16 %v370
    %v887 = vunpack.c.h.b16 %v370
    %v888 = vunpack.c.l.b16 %v371
    %v889 = vunpack.c.h.b16 %v371
    %v890 = vunpack.c.l.b16 %v372
    %v891 = vunpack.c.h.b16 %v372
    %v892 = vunpack.c.l.b16 %v373
    %v893 = vunpack.c.h.b16 %v373
    %v894 = vunpack.c.l.b16 %v374
    %v895 = vunpack.c.h.b16 %v374
    %v896 = vunpack.c.l.b16 %v375
    %v897 = vunpack.c.h.b16 %v375
    %v898 = vunpack.c.l.b16 %v376
    %v899 = vunpack.c.h.b16 %v376
    %v900 = vunpack.c.l.b16 %v377
    %v901 = vunpack.c.h.b16 %v377
    %v902 = vunpack.c.l.b16 %v378
    %v903 = vunpack.c.h.b16 %v378
    %v904 = vunpack.c.l.b16 %v379
    %v905 = vunpack.c.h.b16 %v379
    %v906 = vunpack.c.l.b16 %v380
    %v907 = vunpack.c.h.b16 %v380
    %v908 = vunpack.c.l.b16 %v381
    %v909 = vunpack.c.h.b16 %v381
    %v910 = vunpack.c.l.b16 %v382
    %v911 = vunpack.c.h.b16 %v382
    %v912 = vunpack.c.l.b16 %v383
    %v913 = vunpack.c.h.b16 %v383
    %v914 = vunpack.c.l.b16 %v384
    %v915 = vunpack.c.h.b16 %v384
    %v916 = vunpack.c.l.b16 %v385
    %v917 = vunpack.c.h.b16 %v385
    %v918 = vunpack.c.l.b16 %v386
    %v919 = vunpack.c.h.b16 %v386
    %v920 = vunpack.c.l.b16 %v387
    %v921 = vunpack.c.h.b16 %v387
    %v922 = vunpack.c.l.b16 %v388
    %v923 = vunpack.c.h.b16 %v388
    %v924 = vunpack.c.l.b16 %v389
    %v925 = vunpack.c.h.b16 %v389
    %v926 = vunpack.c.l.b16 %v390
    %v927 = vunpack.c.h.b16 %v390
    %v928 = vunpack.c.l.b16 %v391
    %v929 = vunpack.c.h.b16 %v391
    %v930 = vunpack.c.l.b16 %v392
    %v931 = vunpack.c.h.b16 %v392
    %v932 = vunpack.c.l.b16 %v393
    %v933 = vunpack.c.h.b16 %v393
    %v934 = vunpack.c.l.b16 %v394
    %v935 = vunpack.c.h.b16 %v394
    %v936 = vunpack.c.l.b16 %v395
    %v937 = vunpack.c.h.b16 %v395
    %v938 = vunpack.c.l.b16 %v396
    %v939 = vunpack.c.h.b16 %v396
    %v940 = vunpack.c.l.b16 %v397
    %v941 = vunpack.c.h.b16 %v397
    %v942 = vunpack.c.l.b16 %v398
    %v943 = vunpack.c.h.b16 %v398
    %v944 = vunpack.c.l.b16 %v399
    %v945 = vunpack.c.h.b16 %v399
    %v946 = vunpack.c.l.b16 %v400
    %v947 = vunpack.c.h.b16 %v400
    %v948 = vunpack.c.l.b16 %v401
    %v949 = vunpack.c.h.b16 %v401
    %v950 = vunpack.c.l.b16 %v402
    %v951 = vunpack.c.h.b16 %v402
    %v952 = vunpack.c.l.b16 %v403
    %v953 = vunpack.c.h.b16 %v403
    %v954 = vunpack.c.l.b16 %v404
    %v955 = vunpack.c.h.b16 %v404
    %v956 = vunpack.c.l.b16 %v405
    %v957 = vunpack.c.h.b16 %v405
    %v958 = vunpack.c.l.b16 %v406
    %v959 = vunpack.c.h.b16 %v406
    %v960 = vunpack.c.l.b16 %v407
    %v961 = vunpack.c.h.b16 %v407
    %v962 = vunpack.c.l.b16 %v408
    %v963 = vunpack.c.h.b16 %v408
    %v964 = vunpack.c.l.b16 %v409
    %v965 = vunpack.c.h.b16 %v409
    %v966 = vunpack.c.l.b16 %v410
    %v967 = vunpack.c.h.b16 %v410
    %v968 = vunpack.c.l.b16 %v411
    %v969 = vunpack.c.h.b16 %v411
    %v970 = vunpack.c.l.b16 %v412
    %v971 = vunpack.c.h.b16 %v412
    %v972 = vunpack.c.l.b16 %v413
    %v973 = vunpack.c.h.b16 %v413
    %v974 = vunpack.c.l.b16 %v414
    %v975 = vunpack.c.h.b16 %v414
    %v976 = vunpack.c.l.b16 %v415
    %v977 = vunpack.c.h.b16 %v415
    %v978 = vunpack.c.l.b16 %v416
    %v979 = vunpack.c.h.b16 %v416
    %v980 = vunpack.c.l.b16 %v417
    %v981 = vunpack.c.h.b16 %v417
    %v982 = vunpack.c.l.b16 %v418
    %v983 = vunpack.c.h.b16 %v418
    %v984 = vunpack.c.l.b16 %v419
    %v985 = vunpack.c.h.b16 %v419
    %v986 = vunpack.c.l.b16 %v420
    %v987 = vunpack.c.h.b16 %v420
    %v988 = vunpack.c.l.b16 %v421
    %v989 = vunpack.c.h.b16 %v421
    %v990 = vunpack.c.l.b16 %v422
    %v991 = vunpack.c.h.b16 %v422
    %v992 = vunpack.c.l.b16 %v423
    %v993 = vunpack.c.h.b16 %v423
    %v994 = vunpack.c.l.b16 %v424
    %v995 = vunpack.c.h.b16 %v424
    %v996 = vunpack.c.l.b16 %v425
    %v997 = vunpack.c.h.b16 %v425
    %v998 = vunpack.c.l.b16 %v426
    %v999 = vunpack.c.h.b16 %v426
    %v1000 = vunpack.c.l.b16 %v427
    %v1001 = vunpack.c.h.b16 %v427
    %v1002 = vunpack.c.l.b16 %v428
    %v1003 = vunpack.c.h.b16 %v428
    %v1004 = vunpack.c.l.b16 %v429
    %v1005 = vunpack.c.h.b16 %v429
    %v1006 = vunpack.c.l.b16 %v430
    %v1007 = vunpack.c.h.b16 %v430
    %v1008 = vunpack.c.l.b16 %v431
    %v1009 = vunpack.c.h.b16 %v431
    %v1010 = vunpack.c.l.b16 %v432
    %v1011 = vunpack.c.h.b16 %v432
    %v1012 = vunpack.c.l.b16 %v433
    %v1013 = vunpack.c.h.b16 %v433
    %v1014 = vunpack.c.l.b16 %v434
    %v1015 = vunpack.c.h.b16 %v434
    %v1016 = vunpack.c.l.b16 %v435
    %v1017 = vunpack.c.h.b16 %v435
    %v1018 = vunpack.c.l.b16 %v436
    %v1019 = vunpack.c.h.b16 %v436
    %v1020 = vunpack.c.l.b16 %v437
    %v1021 = vunpack.c.h.b16 %v437
    %v1022 = vunpack.c.l.b16 %v438
    %v1023 = vunpack.c.h.b16 %v438
    %v1024 = vunpack.c.l.b16 %v439
    %v1025 = vunpack.c.h.b16 %v439
    %v1026 = vunpack.c.l.b16 %v440
    %v1027 = vunpack.c.h.b16 %v440
    %v1028 = vunpack.c.l.b16 %v441
    %v1029 = vunpack.c.h.b16 %v441
    %v1030 = vunpack.c.l.b16 %v442
    %v1031 = vunpack.c.h.b16 %v442
    %v1032 = vunpack.c.l.b16 %v443
    %v1033 = vunpack.c.h.b16 %v443
    %v1034 = vunpack.c.l.b16 %v444
    %v1035 = vunpack.c.h.b16 %v444
    %v1036 = vunpack.c.l.b16 %v445
    %v1037 = vunpack.c.h.b16 %v445
    %v1038 = vunpack.c.l.b16 %v446
    %v1039 = vunpack.c.h.b16 %v446
    %v1040 = vunpack.c.l.b16 %v447
    %v1041 = vunpack.c.h.b16 %v447
    %v1042 = vunpack.c.l.b16 %v448
    %v1043 = vunpack.c.h.b16 %v448
    %v1044 = vunpack.c.l.b16 %v449
    %v1045 = vunpack.c.h.b16 %v449
    %v1046 = vunpack.c.l.b16 %v450
    %v1047 = vunpack.c.h.b16 %v450
    %v1048 = vunpack.c.l.b16 %v451
    %v1049 = vunpack.c.h.b16 %v451
    %v1050 = vunpack.c.l.b16 %v452
    %v1051 = vunpack.c.h.b16 %v452
    %v1052 = vunpack.c.l.b16 %v453
    %v1053 = vunpack.c.h.b16 %v453
    %v1054 = vunpack.c.l.b16 %v454
    %v1055 = vunpack.c.h.b16 %v454
    %v1056 = vunpack.c.l.b16 %v455
    %v1057 = vunpack.c.h.b16 %v455
    %v1058 = vunpack.c.l.b16 %v456
    %v1059 = vunpack.c.h.b16 %v456
    %v1060 = vunpack.c.l.b16 %v457
    %v1061 = vunpack.c.h.b16 %v457
    %v1062 = vunpack.c.l.b16 %v458
    %v1063 = vunpack.c.h.b16 %v458
    %v1064 = vunpack.c.l.b16 %v459
    %v1065 = vunpack.c.h.b16 %v459
    %v1066 = vunpack.c.l.b16 %v460
    %v1067 = vunpack.c.h.b16 %v460
    %v1068 = vunpack.c.l.b16 %v461
    %v1069 = vunpack.c.h.b16 %v461
    %v1070 = vunpack.c.l.b16 %v462
    %v1071 = vunpack.c.h.b16 %v462
    %v1072 = vunpack.c.l.b16 %v463
    %v1073 = vunpack.c.h.b16 %v463
    %v1074 = vunpack.c.l.b16 %v464
    %v1075 = vunpack.c.h.b16 %v464
    %v1076 = vunpack.c.l.b16 %v465
    %v1077 = vunpack.c.h.b16 %v465
    %v1078 = vunpack.c.l.b16 %v466
    %v1079 = vunpack.c.h.b16 %v466
    %v1080 = vunpack.c.l.b16 %v467
    %v1081 = vunpack.c.h.b16 %v467
    %v1082 = vunpack.c.l.b16 %v468
    %v1083 = vunpack.c.h.b16 %v468
    %v1084 = vunpack.c.l.b16 %v469
    %v1085 = vunpack.c.h.b16 %v469
    %v1086 = vunpack.c.l.b16 %v470
    %v1087 = vunpack.c.h.b16 %v470
    %v1088 = vunpack.c.l.b16 %v471
    %v1089 = vunpack.c.h.b16 %v471
    %v1090 = vpack.c.b16 %v714, %v706
    %v1091 = vpack.c.b16 %v715, %v707
    %v1092 = vpack.c.b16 %v716, %v708
    %v1093 = vpack.c.b16 %v717, %v709
    %v1094 = vpack.c.b16 %v718, %v710
    %v1095 = vpack.c.b16 %v719, %v711
    %v1096 = vpack.c.b16 %v720, %v712
    %v1097 = vpack.c.b16 %v721, %v713
    %v1098 = vpack.c.b16 %v730, %v722
    %v1099 = vpack.c.b16 %v731, %v723
    %v1100 = vpack.c.b16 %v732, %v724
    %v1101 = vpack.c.b16 %v733, %v725
    %v1102 = vpack.c.b16 %v734, %v726
    %v1103 = vpack.c.b16 %v735, %v727
    %v1104 = vpack.c.b16 %v736, %v728
    %v1105 = vpack.c.b16 %v737, %v729
    %v1106 = vpack.c.b16 %v746, %v738
    %v1107 = vpack.c.b16 %v747, %v739
    %v1108 = vpack.c.b16 %v748, %v740
    %v1109 = vpack.c.b16 %v749, %v741
    %v1110 = vpack.c.b16 %v750, %v742
    %v1111 = vpack.c.b16 %v751, %v743
    %v1112 = vpack.c.b16 %v752, %v744
    %v1113 = vpack.c.b16 %v753, %v745
    %v1114 = vpack.c.b16 %v762, %v754
    %v1115 = vpack.c.b16 %v763, %v755
    %v1116 = vpack.c.b16 %v764, %v756
    %v1117 = vpack.c.b16 %v765, %v757
    %v1118 = vpack.c.b16 %v766, %v758
    %v1119 = vpack.c.b16 %v767, %v759
    %v1120 = vpack.c.b16 %v768, %v760
    %v1121 = vpack.c.b16 %v769, %v761
    %v1122 = vpack.c.b16 %v778, %v770
    %v1123 = vpack.c.b16 %v779, %v771
    %v1124 = vpack.c.b16 %v780, %v772
    %v1125 = vpack.c.b16 %v781, %v773
    %v1126 = vpack.c.b16 %v782, %v774
    %v1127 = vpack.c.b16 %v783, %v775
    %v1128 = vpack.c.b16 %v784, %v776
    %v1129 = vpack.c.b16 %v785, %v777
    %v1130 = vpack.c.b16 %v794, %v786
    %v1131 = vpack.c.b16 %v795, %v787
    %v1132 = vpack.c.b16 %v796, %v788
    %v1133 = vpack.c.b16 %v797, %v789
    %v1134 = vpack.c.b16 %v798, %v790
    %v1135 = vpack.c.b16 %v799, %v791
    %v1136 = vpack.c.b16 %v800, %v792
    %v1137 = vpack.c.b16 %v801, %v793
    %v1138 = vpack.c.b16 %v810, %v802
    %v1139 = vpack.c.b16 %v811, %v803
    %v1140 = vpack.c.b16 %v812, %v804
    %v1141 = vpack.c.b16 %v813, %v805
    %v1142 = vpack.c.b16 %v814, %v806
    %v1143 = vpack.c.b16 %v815, %v807
    %v1144 = vpack.c.b16 %v816, %v808
    %v1145 = vpack.c.b16 %v817, %v809
    %v1146 = vpack.c.b16 %v826, %v818
    %v1147 = vpack.c.b16 %v827, %v819
    %v1148 = vpack.c.b16 %v828, %v820
    %v1149 = vpack.c.b16 %v829, %v821
    %v1150 = vpack.c.b16 %v830, %v822
    %v1151 = vpack.c.b16 %v831, %v823
    %v1152 = vpack.c.b16 %v832, %v824
    %v1153 = vpack.c.b16 %v833, %v825
    %v1154 = vpack.c.b16 %v842, %v834
    %v1155 = vpack.c.b16 %v843, %v835
    %v1156 = vpack.c.b16 %v844, %v836
    %v1157 = vpack.c.b16 %v845, %v837
    %v1158 = vpack.c.b16 %v846, %v838
    %v1159 = vpack.c.b16 %v847, %v839
    %v1160 = vpack.c.b16 %v848, %v840
    %v1161 = vpack.c.b16 %v849, %v841
    %v1162 = vpack.c.b16 %v858, %v850
    %v1163 = vpack.c.b16 %v859, %v851
    %v1164 = vpack.c.b16 %v860, %v852
    %v1165 = vpack.c.b16 %v861, %v853
    %v1166 = vpack.c.b16 %v862, %v854
    %v1167 = vpack.c.b16 %v863, %v855
    %v1168 = vpack.c.b16 %v864, %v856
    %v1169 = vpack.c.b16 %v865, %v857
    %v1170 = vpack.c.b16 %v874, %v866
    %v1171 = vpack.c.b16 %v875, %v867
    %v1172 = vpack.c.b16 %v876, %v868
    %v1173 = vpack.c.b16 %v877, %v869
    %v1174 = vpack.c.b16 %v878, %v870
    %v1175 = vpack.c.b16 %v879, %v871
    %v1176 = vpack.c.b16 %v880, %v872
    %v1177 = vpack.c.b16 %v881, %v873
    %v1178 = vpack.c.b16 %v890, %v882
    %v1179 = vpack.c.b16 %v891, %v883
    %v1180 = vpack.c.b16 %v892, %v884
    %v1181 = vpack.c.b16 %v893, %v885
    %v1182 = vpack.c.b16 %v894, %v886
    %v1183 = vpack.c.b16 %v895, %v887
    %v1184 = vpack.c.b16 %v896, %v888
    %v1185 = vpack.c.b16 %v897, %v889
    %v1186 = vpack.c.b16 %v906, %v898
    %v1187 = vpack.c.b16 %v907, %v899
    %v1188 = vpack.c.b16 %v908, %v900
    %v1189 = vpack.c.b16 %v909, %v901
    %v1190 = vpack.c.b16 %v910, %v902
    %v1191 = vpack.c.b16 %v911, %v903
    %v1192 = vpack.c.b16 %v912, %v904
    %v1193 = vpack.c.b16 %v913, %v905
    %v1194 = vpack.c.b16 %v922, %v914
    %v1195 = vpack.c.b16 %v923, %v915
    %v1196 = vpack.c.b16 %v924, %v916
    %v1197 = vpack.c.b16 %v925, %v917
    %v1198 = vpack.c.b16 %v926, %v918
    %v1199 = vpack.c.b16 %v927, %v919
    %v1200 = vpack.c.b16 %v928, %v920
    %v1201 = vpack.c.b16 %v929, %v921
    %v1202 = vpack.c.b16 %v938, %v930
    %v1203 = vpack.c.b16 %v939, %v931
    %v1204 = vpack.c.b16 %v940, %v932
    %v1205 = vpack.c.b16 %v941, %v933
    %v1206 = vpack.c.b16 %v942, %v934
    %v1207 = vpack.c.b16 %v943, %v935
    %v1208 = vpack.c.b16 %v944, %v936
    %v1209 = vpack.c.b16 %v945, %v937
    %v1210 = vpack.c.b16 %v954, %v946
    %v1211 = vpack.c.b16 %v955, %v947
    %v1212 = vpack.c.b16 %v956, %v948
    %v1213 = vpack.c.b16 %v957, %v949
    %v1214 = vpack.c.b16 %v958, %v950
    %v1215 = vpack.c.b16 %v959, %v951
    %v1216 = vpack.c.b16 %v960, %v952
    %v1217 = vpack.c.b16 %v961, %v953
    %v1218 = vpack.c.b16 %v970, %v962
    %v1219 = vpack.c.b16 %v971, %v963
    %v1220 = vpack.c.b16 %v972, %v964
    %v1221 = vpack.c.b16 %v973, %v965
    %v1222 = vpack.c.b16 %v974, %v966
    %v1223 = vpack.c.b16 %v975, %v967
    %v1224 = vpack.c.b16 %v976, %v968
    %v1225 = vpack.c.b16 %v977, %v969
    %v1226 = vpack.c.b16 %v986, %v978
    %v1227 = vpack.c.b16 %v987, %v979
    %v1228 = vpack.c.b16 %v988, %v980
    %v1229 = vpack.c.b16 %v989, %v981
    %v1230 = vpack.c.b16 %v990, %v982
    %v1231 = vpack.c.b16 %v991, %v983
    %v1232 = vpack.c.b16 %v992, %v984
    %v1233 = vpack.c.b16 %v993, %v985
    %v1234 = vpack.c.b16 %v1002, %v994
    %v1235 = vpack.c.b16 %v1003, %v995
    %v1236 = vpack.c.b16 %v1004, %v996
    %v1237 = vpack.c.b16 %v1005, %v997
    %v1238 = vpack.c.b16 %v1006, %v998
    %v1239 = vpack.c.b16 %v1007, %v999
    %v1240 = vpack.c.b16 %v1008, %v1000
    %v1241 = vpack.c.b16 %v1009, %v1001
    %v1242 = vpack.c.b16 %v1018, %v1010
    %v1243 = vpack.c.b16 %v1019, %v1011
    %v1244 = vpack.c.b16 %v1020, %v1012
    %v1245 = vpack.c.b16 %v1021, %v1013
    %v1246 = vpack.c.b16 %v1022, %v1014
    %v1247 = vpack.c.b16 %v1023, %v1015
    %v1248 = vpack.c.b16 %v1024, %v1016
    %v1249 = vpack.c.b16 %v1025, %v1017
    %v1250 = vpack.c.b16 %v1034, %v1026
    %v1251 = vpack.c.b16 %v1035, %v1027
    %v1252 = vpack.c.b16 %v1036, %v1028
    %v1253 = vpack.c.b16 %v1037, %v1029
    %v1254 = vpack.c.b16 %v1038, %v1030
    %v1255 = vpack.c.b16 %v1039, %v1031
    %v1256 = vpack.c.b16 %v1040, %v1032
    %v1257 = vpack.c.b16 %v1041, %v1033
    %v1258 = vpack.c.b16 %v1050, %v1042
    %v1259 = vpack.c.b16 %v1051, %v1043
    %v1260 = vpack.c.b16 %v1052, %v1044
    %v1261 = vpack.c.b16 %v1053, %v1045
    %v1262 = vpack.c.b16 %v1054, %v1046
    %v1263 = vpack.c.b16 %v1055, %v1047
    %v1264 = vpack.c.b16 %v1056, %v1048
    %v1265 = vpack.c.b16 %v1057, %v1049
    %v1266 = vpack.c.b16 %v1066, %v1058
    %v1267 = vpack.c.b16 %v1067, %v1059
    %v1268 = vpack.c.b16 %v1068, %v1060
    %v1269 = vpack.c.b16 %v1069, %v1061
    %v1270 = vpack.c.b16 %v1070, %v1062
    %v1271 = vpack.c.b16 %v1071, %v1063
    %v1272 = vpack.c.b16 %v1072, %v1064
    %v1273 = vpack.c.b16 %v1073, %v1065
    %v1274 = vpack.c.b16 %v1082, %v1074
    %v1275 = vpack.c.b16 %v1083, %v1075
    %v1276 = vpack.c.b16 %v1084, %v1076
    %v1277 = vpack.c.b16 %v1085, %v1077
    %v1278 = vpack.c.b16 %v1086, %v1078
    %v1279 = vpack.c.b16 %v1087, %v1079
    %v1280 = vpack.c.b16 %v1088, %v1080
    %v1281 = vpack.c.b16 %v1089, %v1081
    %1474 = vmatprep.subr.bf16.mxu0 %v1091
    %1475 = vmatpush1.bf16.msra.mxu0 %v1090
    %1476 = vmatprep.subr.bf16.mxu0 %v1099
    %1477 = vmatpush1.bf16.msra.mxu0 %v1098
    %1478 = vmatprep.subr.bf16.mxu0 %v1107
    %1479 = vmatpush1.bf16.msra.mxu0 %v1106
    %1480 = vmatprep.subr.bf16.mxu0 %v1115
    %1481 = vmatpush1.bf16.msra.mxu0 %v1114
    %1482 = vmatprep.subr.bf16.mxu0 %v1123
    %1483 = vmatpush1.bf16.msra.mxu0 %v1122
    %1484 = vmatprep.subr.bf16.mxu0 %v1131
    %1485 = vmatpush1.bf16.msra.mxu0 %v1130
    %1486 = vmatprep.subr.bf16.mxu0 %v1139
    %1487 = vmatpush1.bf16.msra.mxu0 %v1138
    %1488 = vmatprep.subr.bf16.mxu0 %v1147
    %1489 = vmatpush1.bf16.msra.mxu0 %v1146
    %1490 = vmatprep.subr.bf16.mxu0 %v1155
    %1491 = vmatpush1.bf16.msra.mxu0 %v1154
    %1492 = vmatprep.subr.bf16.mxu0 %v1163
    %1493 = vmatpush1.bf16.msra.mxu0 %v1162
    %1494 = vmatprep.subr.bf16.mxu0 %v1171
    %1495 = vmatpush1.bf16.msra.mxu0 %v1170
    %1496 = vmatprep.subr.bf16.mxu0 %v1179
    %1497 = vmatpush1.bf16.msra.mxu0 %v1178
    %1498 = vmatprep.subr.bf16.mxu0 %v1187
    %1499 = vmatpush1.bf16.msra.mxu0 %v1186
    %1500 = vmatprep.subr.bf16.mxu0 %v1195
    %1501 = vmatpush1.bf16.msra.mxu0 %v1194
    %1502 = vmatprep.subr.bf16.mxu0 %v1203
    %1503 = vmatpush1.bf16.msra.mxu0 %v1202
    %1504 = vmatprep.subr.bf16.mxu0 %v1211
    %1505 = vmatpush1.bf16.msra.mxu0 %v1210
    %1506 = vmatprep.mubr.bf16.mxu0 %v278
    %1507 = vmatmul.mubr.bf16.gmra.mrb[0].mxu0 %v277
    %v1508 = vpop.f32.mrb[0].mxu0
    %v1509 = vadd.f32 %v477, %v1508
    %v1510 = vpop.f32.mrb[0].mxu0
    %v1511 = vadd.f32 %v481, %v1510
    %v1512 = vpop.f32.mrb[0].mxu0
    %v1513 = vadd.f32 %v477, %v1512
    %v1514 = vpop.f32.mrb[0].mxu0
    %v1515 = vadd.f32 %v481, %v1514
    %1516 = vdwg.mxu0
    %1517 = vmatprep.subr.bf16.mxu0 %v1219
    %1518 = vmatpush1.bf16.msra.mxu0 %v1218
    %1519 = vmatprep.subr.bf16.mxu0 %v1227
    %1520 = vmatpush1.bf16.msra.mxu0 %v1226
    %1521 = vmatprep.subr.bf16.mxu0 %v1235
    %1522 = vmatpush1.bf16.msra.mxu0 %v1234
    %1523 = vmatprep.subr.bf16.mxu0 %v1243
    %1524 = vmatpush1.bf16.msra.mxu0 %v1242
    %1525 = vmatprep.subr.bf16.mxu0 %v1251
    %1526 = vmatpush1.bf16.msra.mxu0 %v1250
    %1527 = vmatprep.subr.bf16.mxu0 %v1259
    %1528 = vmatpush1.bf16.msra.mxu0 %v1258
    %1529 = vmatprep.subr.bf16.mxu0 %v1267
    %1530 = vmatpush1.bf16.msra.mxu0 %v1266
    %1531 = vmatprep.subr.bf16.mxu0 %v1275
    %1532 = vmatpush1.bf16.msra.mxu0 %v1274
    %1533 = vmatprep.subr.bf16.mxu0 0
    %1534 = vmatpush1.bf16.msra.mxu0 0
    %1535 = vmatprep.subr.bf16.mxu0 0
    %1536 = vmatpush1.bf16.msra.mxu0 0
    %1537 = vmatprep.subr.bf16.mxu0 0
    %1538 = vmatpush1.bf16.msra.mxu0 0
    %1539 = vmatprep.subr.bf16.mxu0 0
    %1540 = vmatpush1.bf16.msra.mxu0 0
    %1541 = vmatprep.subr.bf16.mxu0 0
    %1542 = vmatpush1.bf16.msra.mxu0 0
    %1543 = vmatprep.subr.bf16.mxu0 0
    %1544 = vmatpush1.bf16.msra.mxu0 0
    %1545 = vmatprep.subr.bf16.mxu0 0
    %1546 = vmatpush1.bf16.msra.mxu0 0
    %1547 = vmatprep.subr.bf16.mxu0 0
    %1548 = vmatpush1.bf16.msra.mxu0 0
    %1549 = vmatprep.mubr.bf16.mxu0 0
    %1550 = vmatmul.mubr.bf16.gmra.mrb[0].mxu0 %v279
    %v1551 = vpop.f32.mrb[0].mxu0
    %v1552 = vadd.f32 %v1509, %v1551
    %v1553 = vpop.f32.mrb[0].mxu0
    %v1554 = vadd.f32 %v1511, %v1553
    %v1555 = vpop.f32.mrb[0].mxu0
    %v1556 = vadd.f32 %v1513, %v1555
    %v1557 = vpop.f32.mrb[0].mxu0
    %v1558 = vadd.f32 %v1515, %v1557
    %1559 = vdwg.mxu0
    %1560 = vmatprep.subr.bf16.mxu0 %v1093
    %1561 = vmatpush1.bf16.msra.mxu0 %v1092
    %1562 = vmatprep.subr.bf16.mxu0 %v1101
    %1563 = vmatpush1.bf16.msra.mxu0 %v1100
    %1564 = vmatprep.subr.bf16.mxu0 %v1109
    %1565 = vmatpush1.bf16.msra.mxu0 %v1108
    %1566 = vmatprep.subr.bf16.mxu0 %v1117
    %1567 = vmatpush1.bf16.msra.mxu0 %v1116
    %1568 = vmatprep.subr.bf16.mxu0 %v1125
    %1569 = vmatpush1.bf16.msra.mxu0 %v1124
    %1570 = vmatprep.subr.bf16.mxu0 %v1133
    %1571 = vmatpush1.bf16.msra.mxu0 %v1132
    %1572 = vmatprep.subr.bf16.mxu0 %v1141
    %1573 = vmatpush1.bf16.msra.mxu0 %v1140
    %1574 = vmatprep.subr.bf16.mxu0 %v1149
    %1575 = vmatpush1.bf16.msra.mxu0 %v1148
    %1576 = vmatprep.subr.bf16.mxu0 %v1157
    %1577 = vmatpush1.bf16.msra.mxu0 %v1156
    %1578 = vmatprep.subr.bf16.mxu0 %v1165
    %1579 = vmatpush1.bf16.msra.mxu0 %v1164
    %1580 = vmatprep.subr.bf16.mxu0 %v1173
    %1581 = vmatpush1.bf16.msra.mxu0 %v1172
    %1582 = vmatprep.subr.bf16.mxu0 %v1181
    %1583 = vmatpush1.bf16.msra.mxu0 %v1180
    %1584 = vmatprep.subr.bf16.mxu0 %v1189
    %1585 = vmatpush1.bf16.msra.mxu0 %v1188
    %1586 = vmatprep.subr.bf16.mxu0 %v1197
    %1587 = vmatpush1.bf16.msra.mxu0 %v1196
    %1588 = vmatprep.subr.bf16.mxu0 %v1205
    %1589 = vmatpush1.bf16.msra.mxu0 %v1204
    %1590 = vmatprep.subr.bf16.mxu0 %v1213
    %1591 = vmatpush1.bf16.msra.mxu0 %v1212
    %1592 = vmatprep.mubr.bf16.mxu0 %v278
    %1593 = vmatmul.mubr.bf16.gmra.mrb[0].mxu0 %v277
    %v1594 = vpop.f32.mrb[0].mxu0
    %v1595 = vadd.f32 %v485, %v1594
    %v1596 = vpop.f32.mrb[0].mxu0
    %v1597 = vadd.f32 %v489, %v1596
    %v1598 = vpop.f32.mrb[0].mxu0
    %v1599 = vadd.f32 %v485, %v1598
    %v1600 = vpop.f32.mrb[0].mxu0
    %v1601 = vadd.f32 %v489, %v1600
    %1602 = vdwg.mxu0
    %1603 = vmatprep.subr.bf16.mxu0 %v1221
    %1604 = vmatpush1.bf16.msra.mxu0 %v1220
    %1605 = vmatprep.subr.bf16.mxu0 %v1229
    %1606 = vmatpush1.bf16.msra.mxu0 %v1228
    %1607 = vmatprep.subr.bf16.mxu0 %v1237
    %1608 = vmatpush1.bf16.msra.mxu0 %v1236
    %1609 = vmatprep.subr.bf16.mxu0 %v1245
    %1610 = vmatpush1.bf16.msra.mxu0 %v1244
    %1611 = vmatprep.subr.bf16.mxu0 %v1253
    %1612 = vmatpush1.bf16.msra.mxu0 %v1252
    %1613 = vmatprep.subr.bf16.mxu0 %v1261
    %1614 = vmatpush1.bf16.msra.mxu0 %v1260
    %1615 = vmatprep.subr.bf16.mxu0 %v1269
    %1616 = vmatpush1.bf16.msra.mxu0 %v1268
    %1617 = vmatprep.subr.bf16.mxu0 %v1277
    %1618 = vmatpush1.bf16.msra.mxu0 %v1276
    %1619 = vmatprep.subr.bf16.mxu0 0
    %1620 = vmatpush1.bf16.msra.mxu0 0
    %1621 = vmatprep.subr.bf16.mxu0 0
    %1622 = vmatpush1.bf16.msra.mxu0 0
    %1623 = vmatprep.subr.bf16.mxu0 0
    %1624 = vmatpush1.bf16.msra.mxu0 0
    %1625 = vmatprep.subr.bf16.mxu0 0
    %1626 = vmatpush1.bf16.msra.mxu0 0
    %1627 = vmatprep.subr.bf16.mxu0 0
    %1628 = vmatpush1.bf16.msra.mxu0 0
    %1629 = vmatprep.subr.bf16.mxu0 0
    %1630 = vmatpush1.bf16.msra.mxu0 0
    %1631 = vmatprep.subr.bf16.mxu0 0
    %1632 = vmatpush1.bf16.msra.mxu0 0
    %1633 = vmatprep.subr.bf16.mxu0 0
    %1634 = vmatpush1.bf16.msra.mxu0 0
    %1635 = vmatprep.mubr.bf16.mxu0 0
    %1636 = vmatmul.mubr.bf16.gmra.mrb[0].mxu0 %v279
    %v1637 = vpop.f32.mrb[0].mxu0
    %v1638 = vadd.f32 %v1595, %v1637
    %v1639 = vpop.f32.mrb[0].mxu0
    %v1640 = vadd.f32 %v1597, %v1639
    %v1641 = vpop.f32.mrb[0].mxu0
    %v1642 = vadd.f32 %v1599, %v1641
    %v1643 = vpop.f32.mrb[0].mxu0
    %v1644 = vadd.f32 %v1601, %v1643
    %1645 = vdwg.mxu0
    %1646 = vmatprep.subr.bf16.mxu0 %v1095
    %1647 = vmatpush1.bf16.msra.mxu0 %v1094
    %1648 = vmatprep.subr.bf16.mxu0 %v1103
    %1649 = vmatpush1.bf16.msra.mxu0 %v1102
    %1650 = vmatprep.subr.bf16.mxu0 %v1111
    %1651 = vmatpush1.bf16.msra.mxu0 %v1110
    %1652 = vmatprep.subr.bf16.mxu0 %v1119
    %1653 = vmatpush1.bf16.msra.mxu0 %v1118
    %1654 = vmatprep.subr.bf16.mxu0 %v1127
    %1655 = vmatpush1.bf16.msra.mxu0 %v1126
    %1656 = vmatprep.subr.bf16.mxu0 %v1135
    %1657 = vmatpush1.bf16.msra.mxu0 %v1134
    %1658 = vmatprep.subr.bf16.mxu0 %v1143
    %1659 = vmatpush1.bf16.msra.mxu0 %v1142
    %1660 = vmatprep.subr.bf16.mxu0 %v1151
    %1661 = vmatpush1.bf16.msra.mxu0 %v1150
    %1662 = vmatprep.subr.bf16.mxu0 %v1159
    %1663 = vmatpush1.bf16.msra.mxu0 %v1158
    %1664 = vmatprep.subr.bf16.mxu0 %v1167
    %1665 = vmatpush1.bf16.msra.mxu0 %v1166
    %1666 = vmatprep.subr.bf16.mxu0 %v1175
    %1667 = vmatpush1.bf16.msra.mxu0 %v1174
    %1668 = vmatprep.subr.bf16.mxu0 %v1183
    %1669 = vmatpush1.bf16.msra.mxu0 %v1182
    %1670 = vmatprep.subr.bf16.mxu0 %v1191
    %1671 = vmatpush1.bf16.msra.mxu0 %v1190
    %1672 = vmatprep.subr.bf16.mxu0 %v1199
    %1673 = vmatpush1.bf16.msra.mxu0 %v1198
    %1674 = vmatprep.subr.bf16.mxu0 %v1207
    %1675 = vmatpush1.bf16.msra.mxu0 %v1206
    %1676 = vmatprep.subr.bf16.mxu0 %v1215
    %1677 = vmatpush1.bf16.msra.mxu0 %v1214
    %1678 = vmatprep.mubr.bf16.mxu0 %v278
    %1679 = vmatmul.mubr.bf16.gmra.mrb[0].mxu0 %v277
    %v1680 = vpop.f32.mrb[0].mxu0
    %v1681 = vadd.f32 %v493, %v1680
    %v1682 = vpop.f32.mrb[0].mxu0
    %v1683 = vadd.f32 %v497, %v1682
    %v1684 = vpop.f32.mrb[0].mxu0
    %v1685 = vadd.f32 %v493, %v1684
    %v1686 = vpop.f32.mrb[0].mxu0
    %v1687 = vadd.f32 %v497, %v1686
    %1688 = vdwg.mxu0
    %1689 = vmatprep.subr.bf16.mxu0 %v1223
    %1690 = vmatpush1.bf16.msra.mxu0 %v1222
    %1691 = vmatprep.subr.bf16.mxu0 %v1231
    %1692 = vmatpush1.bf16.msra.mxu0 %v1230
    %1693 = vmatprep.subr.bf16.mxu0 %v1239
    %1694 = vmatpush1.bf16.msra.mxu0 %v1238
    %1695 = vmatprep.subr.bf16.mxu0 %v1247
    %1696 = vmatpush1.bf16.msra.mxu0 %v1246
    %1697 = vmatprep.subr.bf16.mxu0 %v1255
    %1698 = vmatpush1.bf16.msra.mxu0 %v1254
    %1699 = vmatprep.subr.bf16.mxu0 %v1263
    %1700 = vmatpush1.bf16.msra.mxu0 %v1262
    %1701 = vmatprep.subr.bf16.mxu0 %v1271
    %1702 = vmatpush1.bf16.msra.mxu0 %v1270
    %1703 = vmatprep.subr.bf16.mxu0 %v1279
    %1704 = vmatpush1.bf16.msra.mxu0 %v1278
    %1705 = vmatprep.subr.bf16.mxu0 0
    %1706 = vmatpush1.bf16.msra.mxu0 0
    %1707 = vmatprep.subr.bf16.mxu0 0
    %1708 = vmatpush1.bf16.msra.mxu0 0
    %1709 = vmatprep.subr.bf16.mxu0 0
    %1710 = vmatpush1.bf16.msra.mxu0 0
    %1711 = vmatprep.subr.bf16.mxu0 0
    %1712 = vmatpush1.bf16.msra.mxu0 0
    %1713 = vmatprep.subr.bf16.mxu0 0
    %1714 = vmatpush1.bf16.msra.mxu0 0
    %1715 = vmatprep.subr.bf16.mxu0 0
    %1716 = vmatpush1.bf16.msra.mxu0 0
    %1717 = vmatprep.subr.bf16.mxu0 0
    %1718 = vmatpush1.bf16.msra.mxu0 0
    %1719 = vmatprep.subr.bf16.mxu0 0
    %1720 = vmatpush1.bf16.msra.mxu0 0
    %1721 = vmatprep.mubr.bf16.mxu0 0
    %1722 = vmatmul.mubr.bf16.gmra.mrb[0].mxu0 %v279
    %v1723 = vpop.f32.mrb[0].mxu0
    %v1724 = vadd.f32 %v1681, %v1723
    %v1725 = vpop.f32.mrb[0].mxu0
    %v1726 = vadd.f32 %v1683, %v1725
    %v1727 = vpop.f32.mrb[0].mxu0
    %v1728 = vadd.f32 %v1685, %v1727
    %v1729 = vpop.f32.mrb[0].mxu0
    %v1730 = vadd.f32 %v1687, %v1729
    %1731 = vdwg.mxu0
    %1732 = vmatprep.subr.bf16.mxu0 %v1097
    %1733 = vmatpush1.bf16.msra.mxu0 %v1096
    %1734 = vmatprep.subr.bf16.mxu0 %v1105
    %1735 = vmatpush1.bf16.msra.mxu0 %v1104
    %1736 = vmatprep.subr.bf16.mxu0 %v1113
    %1737 = vmatpush1.bf16.msra.mxu0 %v1112
    %1738 = vmatprep.subr.bf16.mxu0 %v1121
    %1739 = vmatpush1.bf16.msra.mxu0 %v1120
    %1740 = vmatprep.subr.bf16.mxu0 %v1129
    %1741 = vmatpush1.bf16.msra.mxu0 %v1128
    %1742 = vmatprep.subr.bf16.mxu0 %v1137
    %1743 = vmatpush1.bf16.msra.mxu0 %v1136
    %1744 = vmatprep.subr.bf16.mxu0 %v1145
    %1745 = vmatpush1.bf16.msra.mxu0 %v1144
    %1746 = vmatprep.subr.bf16.mxu0 %v1153
    %1747 = vmatpush1.bf16.msra.mxu0 %v1152
    %1748 = vmatprep.subr.bf16.mxu0 %v1161
    %1749 = vmatpush1.bf16.msra.mxu0 %v1160
    %1750 = vmatprep.subr.bf16.mxu0 %v1169
    %1751 = vmatpush1.bf16.msra.mxu0 %v1168
    %1752 = vmatprep.subr.bf16.mxu0 %v1177
    %1753 = vmatpush1.bf16.msra.mxu0 %v1176
    %1754 = vmatprep.subr.bf16.mxu0 %v1185
    %1755 = vmatpush1.bf16.msra.mxu0 %v1184
    %1756 = vmatprep.subr.bf16.mxu0 %v1193
    %1757 = vmatpush1.bf16.msra.mxu0 %v1192
    %1758 = vmatprep.subr.bf16.mxu0 %v1201
    %1759 = vmatpush1.bf16.msra.mxu0 %v1200
    %1760 = vmatprep.subr.bf16.mxu0 %v1209
    %1761 = vmatpush1.bf16.msra.mxu0 %v1208
    %1762 = vmatprep.subr.bf16.mxu0 %v1217
    %1763 = vmatpush1.bf16.msra.mxu0 %v1216
    %1764 = vmatprep.mubr.bf16.mxu0 %v278
    %1765 = vmatmul.mubr.bf16.gmra.mrb[0].mxu0 %v277
    %v1766 = vpop.f32.mrb[0].mxu0
    %v1767 = vadd.f32 %v501, %v1766
    %v1768 = vpop.f32.mrb[0].mxu0
    %v1769 = vadd.f32 %v505, %v1768
    %v1770 = vpop.f32.mrb[0].mxu0
    %v1771 = vadd.f32 %v501, %v1770
    %v1772 = vpop.f32.mrb[0].mxu0
    %v1773 = vadd.f32 %v505, %v1772
    %1774 = vdwg.mxu0
    %1775 = vmatprep.subr.bf16.mxu0 %v1225
    %1776 = vmatpush1.bf16.msra.mxu0 %v1224
    %1777 = vmatprep.subr.bf16.mxu0 %v1233
    %1778 = vmatpush1.bf16.msra.mxu0 %v1232
    %1779 = vmatprep.subr.bf16.mxu0 %v1241
    %1780 = vmatpush1.bf16.msra.mxu0 %v1240
    %1781 = vmatprep.subr.bf16.mxu0 %v1249
    %1782 = vmatpush1.bf16.msra.mxu0 %v1248
    %1783 = vmatprep.subr.bf16.mxu0 %v1257
    %1784 = vmatpush1.bf16.msra.mxu0 %v1256
    %1785 = vmatprep.subr.bf16.mxu0 %v1265
    %1786 = vmatpush1.bf16.msra.mxu0 %v1264
    %1787 = vmatprep.subr.bf16.mxu0 %v1273
    %1788 = vmatpush1.bf16.msra.mxu0 %v1272
    %1789 = vmatprep.subr.bf16.mxu0 %v1281
    %1790 = vmatpush1.bf16.msra.mxu0 %v1280
    %1791 = vmatprep.subr.bf16.mxu0 0
    %1792 = vmatpush1.bf16.msra.mxu0 0
    %1793 = vmatprep.subr.bf16.mxu0 0
    %1794 = vmatpush1.bf16.msra.mxu0 0
    %1795 = vmatprep.subr.bf16.mxu0 0
    %1796 = vmatpush1.bf16.msra.mxu0 0
    %1797 = vmatprep.subr.bf16.mxu0 0
    %1798 = vmatpush1.bf16.msra.mxu0 0
    %1799 = vmatprep.subr.bf16.mxu0 0
    %1800 = vmatpush1.bf16.msra.mxu0 0
    %1801 = vmatprep.subr.bf16.mxu0 0
    %1802 = vmatpush1.bf16.msra.mxu0 0
    %1803 = vmatprep.subr.bf16.mxu0 0
    %1804 = vmatpush1.bf16.msra.mxu0 0
    %1805 = vmatprep.subr.bf16.mxu0 0
    %1806 = vmatpush1.bf16.msra.mxu0 0
    %1807 = vmatprep.mubr.bf16.mxu0 0
    %1808 = vmatmul.mubr.bf16.gmra.mrb[0].mxu0 %v279
    %v1809 = vpop.f32.mrb[0].mxu0
    %v1810 = vadd.f32 %v1767, %v1809
    %v1811 = vpop.f32.mrb[0].mxu0
    %v1812 = vadd.f32 %v1769, %v1811
    %v1813 = vpop.f32.mrb[0].mxu0
    %v1814 = vadd.f32 %v1771, %v1813
    %v1815 = vpop.f32.mrb[0].mxu0
    %v1816 = vadd.f32 %v1773, %v1815
    %1817 = vdwg.mxu0
    %v1818 = vpack.c.bf16 %v1556, %v1552
    %v1819 = vpack.c.bf16 %v1558, %v1554
    %v1820 = vpack.c.bf16 %v1642, %v1638
    %v1821 = vpack.c.bf16 %v1644, %v1640
    %v1822 = vpack.c.bf16 %v1728, %v1724
    %v1823 = vpack.c.bf16 %v1730, %v1726
    %v1824 = vpack.c.bf16 %v1814, %v1810
    %v1825 = vpack.c.bf16 %v1816, %v1812
    %v1834 = vunpack.c.l.b16 %v1818
    %v1835 = vunpack.c.l.b16 %v1819
    %v1836 = vunpack.c.l.b16 %v1820
    %v1837 = vunpack.c.l.b16 %v1821
    %v1838 = vunpack.c.l.b16 %v1822
    %v1839 = vunpack.c.l.b16 %v1823
    %v1840 = vunpack.c.l.b16 %v1824
    %v1841 = vunpack.c.l.b16 %v1825
    %v1842 = vunpack.c.h.b16 %v1818
    %v1843 = vunpack.c.h.b16 %v1819
    %v1844 = vunpack.c.h.b16 %v1820
    %v1845 = vunpack.c.h.b16 %v1821
    %v1846 = vunpack.c.h.b16 %v1822
    %v1847 = vunpack.c.h.b16 %v1823
    %v1848 = vunpack.c.h.b16 %v1824
    %v1849 = vunpack.c.h.b16 %v1825
    %v1850 = vpack.c.b16 %v1835, %v1834
    %v1851 = vpack.c.b16 %v1837, %v1836
    %v1852 = vpack.c.b16 %v1839, %v1838
    %v1853 = vpack.c.b16 %v1841, %v1840
    %v1854 = vpack.c.b16 %v1843, %v1842
    %v1855 = vpack.c.b16 %v1845, %v1844
    %v1856 = vpack.c.b16 %v1847, %v1846
    %v1857 = vpack.c.b16 %v1849, %v1848
    %1866 = vst [vmem:[#allocation8] sm:$0xff] %v1850
    %1867 = vst [vmem:[#allocation8 + $0x8] sm:$0xff] %v1851
    %1868 = vst [vmem:[#allocation8 + $0x10] sm:$0xff] %v1852
    %1869 = vst [vmem:[#allocation8 + $0x18] sm:$0xff] %v1853
    %1870 = vst [vmem:[#allocation8 + $0x20] sm:$0xff] %v1854
    %1871 = vst [vmem:[#allocation8 + $0x28] sm:$0xff] %v1855
    %1872 = vst [vmem:[#allocation8 + $0x30] sm:$0xff] %v1856
    %1873 = vst [vmem:[#allocation8 + $0x38] sm:$0xff] %v1857
    // Predicated region
    $region34: #{simple_t5_embed_forward.1} parent=1 // pred_check
      _
    $region35: #{simple_t5_embed_forward.1} parent=1 // pred_check_branch
      %1875 = sbr.rel (0) target = $region37
    $region36: #{simple_t5_embed_forward.1} parent=1 // pred_region
      %s1877 = ssub.s32 1024, 1024
      %1878 = vsyncadd [#allocation4], %s1877
      %s1879 = sshll.u32 [#allocation8], 4
      %s1880 = int_to_ptr.vmem [resolvable:$true] %s1879
      %1885 = dma.vmem_to_hbm [thread:$0]  %s1880, 1024, %s5, [#allocation4], 512, 512, 32
    $region37: #{simple_t5_embed_forward.1} parent=1 // pred_fallthru
      _
    // Predicated region
    $region38: #{simple_t5_embed_forward.1} parent=1 // pred_check
      _
    $region39: #{simple_t5_embed_forward.1} parent=1 // pred_check_branch
      %1887 = sbr.rel (0) target = $region41
    $region40: #{simple_t5_embed_forward.1} parent=1 // pred_region
      %1888 = dma.done [#allocation4], 1024
    $region41: #{simple_t5_embed_forward.1} parent=1 // pred_fallthru
      _
    %1889 = vsyncpa [#allocation3], 1
    %1890 = vsyncpa [#allocation6], 1
    %1891 = vsyncpa [#allocation4], 1

</llo_original>
